<compile_context>
chip_gen: v5e
topology: v5e:2x2
jax: 0.10.0
libtpu: 0.0.40
codegen_flags: <defaults>
</compile_context>

<pallas_src>
import functools
import math

import jax
import jax.numpy as jnp
from jax import lax
from jax.experimental import pallas as pl
from jax.experimental.pallas import tpu as pltpu

NEG_INF = -1e9                      # additive mask in f32 score space
VMEM_LIMIT = 64 * 1024 * 1024       # <= physical VMEM on v5e/v6e (128 MiB) and v7x (64 MiB)


def _round_up(x, m):
    return (x + m - 1) // m * m


def _cparams():
    return pltpu.CompilerParams(dimension_semantics=("parallel",),
                                vmem_limit_bytes=VMEM_LIMIT)


# --------------------------- conv / embedding kernels ---------------------------

def _linear_kernel(x_ref, w_ref, b_ref, o_ref, *, activation):
    y = jnp.dot(x_ref[...], w_ref[...], preferred_element_type=jnp.float32) + b_ref[...]
    if activation == "relu":
        y = jnp.maximum(y, 0.0)
    o_ref[...] = y.astype(o_ref.dtype)


def pallas_linear(x_bf16, w_bf16, b, activation=None, out_dtype=jnp.float32, tm=512):
    """x: (M, K) bf16, w: (K, N) bf16, b: (N,) f32 -> (M, N). Row-tiled matmul;
    ragged tail handled by the grid (no host-side pad / slice round trip)."""
    M, K = x_bf16.shape
    N = w_bf16.shape[1]
    tm = min(tm, _round_up(M, 8))
    return pl.pallas_call(
        functools.partial(_linear_kernel, activation=activation),
        out_shape=jax.ShapeDtypeStruct((M, N), out_dtype),
        grid=(pl.cdiv(M, tm),),
        in_specs=[
            pl.BlockSpec((tm, K), lambda i: (i, 0)),
            pl.BlockSpec((K, N), lambda i: (0, 0)),
            pl.BlockSpec((1, N), lambda i: (0, 0)),
        ],
        out_specs=pl.BlockSpec((tm, N), lambda i: (i, 0)),
        compiler_params=_cparams(),
    )(x_bf16, w_bf16, b.reshape(1, N))


def _proj_posenc_kernel(h_ref, w_ref, b_ref, pe_ref, o_ref, *, xscale):
    """Fused subsampling out-projection + PositionalEncoding (x * xscale + pe)."""
    y = jnp.dot(h_ref[0], w_ref[...], preferred_element_type=jnp.float32) + b_ref[...]
    o_ref[0] = y * xscale + pe_ref[...]


def pallas_out_proj_posenc(h_bf16, w_bf16, b, pe, xscale):
    B, T, K = h_bf16.shape
    D = w_bf16.shape[1]
    return pl.pallas_call(
        functools.partial(_proj_posenc_kernel, xscale=xscale),
        out_shape=jax.ShapeDtypeStruct((B, T, D), jnp.float32),
        grid=(B,),
        in_specs=[
            pl.BlockSpec((1, T, K), lambda b_: (b_, 0, 0)),
            pl.BlockSpec((K, D), lambda b_: (0, 0)),
            pl.BlockSpec((1, D), lambda b_: (0, 0)),
            pl.BlockSpec((T, D), lambda b_: (0, 0)),
        ],
        out_specs=pl.BlockSpec((1, T, D), lambda b_: (b_, 0, 0)),
        compiler_params=_cparams(),
    )(h_bf16, w_bf16, b.reshape(1, D), pe)


# ------------------------- fused encoder layer kernel ---------------------------

def _encoder_layer_kernel(lens_ref, x_ref,
                          g1_ref, be1_ref,
                          wqkv_ref, bqkv_ref, wo_ref, bo_ref,
                          g2_ref, be2_ref,
                          w1_ref, b1_ref, w2_ref, b2_ref,
                          o_ref, acc_ref, *, heads, dk, eps, scale):
    """One full pre-norm encoder layer for one batch element, fused:
       LN1 -> per-head packed QKV -> masked softmax attention -> folded out-proj ->
       +residual -> LN2 -> FFN (W1+ReLU, W2) -> +residual."""
    b = pl.program_id(0)
    x = x_ref[0]                                            # (T, D) f32 residual stream
    T, D = x.shape

    # ---- LayerNorm 1 (f32) ----
    mean = jnp.mean(x, axis=-1, keepdims=True)
    var = jnp.mean(jnp.square(x - mean), axis=-1, keepdims=True)
    xn = (x - mean) * lax.rsqrt(var + eps) * g1_ref[...] + be1_ref[...]
    xn_b = xn.astype(jnp.bfloat16)

    # ---- key-padding bias from subsampled length (no HBM mask tensor) ----
    kv_idx = lax.broadcasted_iota(jnp.int32, (1, T), 1)
    bias = jnp.where(kv_idx < lens_ref[b], 0.0, NEG_INF)    # (1, T) f32 additive mask

    # ---- multi-head self-attention: pl.loop over heads bounds live ranges ----
    acc_ref[...] = jnp.zeros_like(acc_ref)

    @pl.loop(0, heads)
    def _per_head(h):
        # packed per-head QKV projection: one matmul, N = 3*dk lanes
        qkv = jnp.dot(xn_b, wqkv_ref[h],
                      preferred_element_type=jnp.float32) + bqkv_ref[h]   # (T, 3*dk)
        q = qkv[:, :dk]
        k = qkv[:, dk:2 * dk]
        v = qkv[:, 2 * dk:]
        # QK^T: contracting dim 1 of both operands maps to the MXU transposed-rhs path
        s = lax.dot_general(q.astype(jnp.bfloat16), k.astype(jnp.bfloat16),
                            (((1,), (1,)), ((), ())),
                            preferred_element_type=jnp.float32) * scale   # (T, T)
        s = s + bias
        s = s - jnp.max(s, axis=-1, keepdims=True)
        e = jnp.exp(s)
        p = e * pl.reciprocal(jnp.sum(e, axis=-1, keepdims=True), approx=True)
        ctx = jnp.dot(p.astype(jnp.bfloat16), v.astype(jnp.bfloat16),
                      preferred_element_type=jnp.float32)                 # (T, dk)
        # output projection folded per head (concat(heads) @ Wo == sum_h ctx_h @ Wo_h);
        # lane-dense N = D accumulation into VMEM scratch
        acc_ref[...] += jnp.dot(ctx.astype(jnp.bfloat16), wo_ref[h],
                                preferred_element_type=jnp.float32)

    x1 = x + acc_ref[...] + bo_ref[...]                     # attention residual

    # ---- LayerNorm 2 + position-wise FFN ----
    mean2 = jnp.mean(x1, axis=-1, keepdims=True)
    var2 = jnp.mean(jnp.square(x1 - mean2), axis=-1, keepdims=True)
    xn2 = (x1 - mean2) * lax.rsqrt(var2 + eps) * g2_ref[...] + be2_ref[...]
    hdn = jnp.dot(xn2.astype(jnp.bfloat16), w1_ref[...],
                  preferred_element_type=jnp.float32) + b1_ref[...]
    hdn = jnp.maximum(hdn, 0.0)
    y = jnp.dot(hdn.astype(jnp.bfloat16), w2_ref[...],
                preferred_element_type=jnp.float32) + b2_ref[...]
    o_ref[0] = x1 + y                                       # FFN residual


def pallas_encoder_layer(x, sub_lens, lp, heads, eps=1e-12):
    B, T, D = x.shape
    dk = D // heads
    U = lp["w1"].shape[1]
    scale = 1.0 / math.sqrt(dk)

    def rep(shape):
        nd = len(shape)
        return pl.BlockSpec(shape, lambda b_, lens: (0,) * nd)

    grid_spec = pltpu.PrefetchScalarGridSpec(
        num_scalar_prefetch=1,
        grid=(B,),
        in_specs=[
            pl.BlockSpec((1, T, D), lambda b_, lens: (b_, 0, 0)),   # x
            rep((1, D)), rep((1, D)),                               # ln1 gamma/beta
            rep((heads, D, 3 * dk)), rep((heads, 1, 3 * dk)),       # packed QKV w/b
            rep((heads, dk, D)), rep((1, D)),                       # out-proj w/b
            rep((1, D)), rep((1, D)),                               # ln2 gamma/beta
            rep((D, U)), rep((1, U)),                               # FFN w1/b1
            rep((U, D)), rep((1, D)),                               # FFN w2/b2
        ],
        out_specs=pl.BlockSpec((1, T, D), lambda b_, lens: (b_, 0, 0)),
        scratch_shapes=[pltpu.VMEM((T, D), jnp.float32)],
    )
    # TODO(synk): for v7x megacore with small/odd B, add a query-tile grid axis
    #             (grid=(B, T//tq)) and single-buffer the grid-invariant weight blocks.
    return pl.pallas_call(
        functools.partial(_encoder_layer_kernel, heads=heads, dk=dk, eps=eps, scale=scale),
        out_shape=jax.ShapeDtypeStruct((B, T, D), jnp.float32),
        grid_spec=grid_spec,
        compiler_params=_cparams(),
    )(sub_lens, x,
      lp["ln1_g"].reshape(1, D), lp["ln1_b"].reshape(1, D),
      lp["wqkv_h"], lp["bqkv_h"], lp["wo_h"], lp["bo"].reshape(1, D),
      lp["ln2_g"].reshape(1, D), lp["ln2_b"].reshape(1, D),
      lp["w1"], lp["b1"].reshape(1, U), lp["w2"], lp["b2"].reshape(1, D))


# ------------------------------ final LayerNorm ---------------------------------

def _layernorm_kernel(x_ref, g_ref, b_ref, o_ref, *, eps):
    x = x_ref[...]
    mean = jnp.mean(x, axis=-1, keepdims=True)
    var = jnp.mean(jnp.square(x - mean), axis=-1, keepdims=True)
    o_ref[...] = (x - mean) * lax.rsqrt(var + eps) * g_ref[...] + b_ref[...]


def pallas_layernorm(x, gamma, beta, eps=1e-12, tm=512):
    shp = x.shape
    D = shp[-1]
    x2 = x.reshape(-1, D)
    M = x2.shape[0]
    tm = min(tm, _round_up(M, 8))
    out = pl.pallas_call(
        functools.partial(_layernorm_kernel, eps=eps),
        out_shape=jax.ShapeDtypeStruct((M, D), jnp.float32),
        grid=(pl.cdiv(M, tm),),
        in_specs=[
            pl.BlockSpec((tm, D), lambda i: (i, 0)),
            pl.BlockSpec((1, D), lambda i: (0, 0)),
            pl.BlockSpec((1, D), lambda i: (0, 0)),
        ],
        out_specs=pl.BlockSpec((tm, D), lambda i: (i, 0)),
        compiler_params=_cparams(),
    )(x2, gamma.reshape(1, D), beta.reshape(1, D))
    return out.reshape(shp)


# ------------------------------- glue (JAX) --------------------------------

def im2col(x, kh, kw, stride):
    """x: (B, C, H, W) -> (B, Ho, Wo, C*kh*kw), patch order (C, kh, kw)."""
    B, C, H, W = x.shape
    Ho = (H - kh) // stride + 1
    Wo = (W - kw) // stride + 1
    pats = []
    for i in range(kh):
        for j in range(kw):
            pats.append(x[:, :, i:i + stride * Ho:stride, j:j + stride * Wo:stride])
    p = jnp.stack(pats, axis=2)                    # (B, C, kh*kw, Ho, Wo)
    p = p.transpose(0, 3, 4, 1, 2).reshape(B, Ho, Wo, C * kh * kw)
    return p


def make_pe(T, d):
    position = jnp.arange(T, dtype=jnp.float32)[:, None]
    div_term = jnp.exp(
        jnp.arange(0, d, 2, dtype=jnp.float32) * -(math.log(10000.0) / d))
    pe = jnp.zeros((T, d), jnp.float32)
    pe = pe.at[:, 0::2].set(jnp.sin(position * div_term))
    pe = pe.at[:, 1::2].set(jnp.cos(position * div_term))
    return pe


def conv2d_subsampling4(xs, params, d_model, pe, xscale):
    """Conv2dSubsampling4: two Conv2d(k=3,s=2)+ReLU (as im2col+matmul kernels), then
    Linear fused with positional encoding.  Patches / conv activations are kept bf16
    on the host side (this stage is HBM-bandwidth bound)."""
    # TODO(synk): form conv patches inside a Pallas kernel (overlapping BlockSpec
    #             windows) instead of materializing the 9x-inflated im2col tensor in HBM.
    B, T, Din = xs.shape
    x = xs[:, None, :, :]                                       # (B, 1, T, D) "NCHW"
    p1 = im2col(x, 3, 3, 2).astype(jnp.bfloat16)                # (B, T1, F1, 9)
    _, T1, F1, K1 = p1.shape
    h1 = pallas_linear(p1.reshape(-1, K1), params["conv1_w"], params["conv1_b"],
                       activation="relu", out_dtype=jnp.bfloat16)
    h1 = h1.reshape(B, T1, F1, d_model).transpose(0, 3, 1, 2)   # (B, C, T1, F1) bf16
    p2 = im2col(h1, 3, 3, 2)                                    # (B, T2, F2, C*9) bf16
    _, T2, F2, K2 = p2.shape
    h2 = pallas_linear(p2.reshape(-1, K2), params["conv2_w"], params["conv2_b"],
                       activation="relu", out_dtype=jnp.bfloat16)
    h2 = h2.reshape(B, T2, F2, d_model)
    # PyTorch: x.transpose(1,2).view(b, t, c*f)  -> flatten (C, F) with C outer
    h2 = h2.transpose(0, 1, 3, 2).reshape(B, T2, d_model * F2)
    return pallas_out_proj_posenc(h2, params["out_w"], params["out_b"], pe, xscale)


def base_encoder_forward(params, xs, xs_lens, d_model, heads):
    B, T, _ = xs.shape
    # masks = ~make_pad_mask(xs_lens).unsqueeze(1) -> (B, 1, T) bool
    t_idx = jnp.arange(T)
    masks = (t_idx[None, :] < xs_lens[:, None])[:, None, :]
    sub_masks = masks[:, :, 2::2][:, :, 2::2]                   # subsampled mask (B,1,T')
    # mask is a prefix of Trues -> equivalent to "kv_idx < sub_len" built in-kernel
    sub_lens = jnp.sum(sub_masks, axis=-1).reshape(B).astype(jnp.int32)

    Tp = sub_masks.shape[-1]
    pe = make_pe(Tp, d_model)
    x = conv2d_subsampling4(xs, params, d_model, pe, math.sqrt(float(d_model)))
    # add_optional_chunk_mask(use_dynamic_chunk=False, static_chunk_size=0) -> masks

    # TODO(synk): stretch goal — run all num_blocks layers inside one kernel with weights
    #             streamed from HBM (memory_space=pl.ANY + emit_pipeline) and write each
    #             layer's output at its lane offset in the concat buffer.
    outs = []
    for lp in params["layers"]:
        x = pallas_encoder_layer(x, sub_lens, lp, heads)        # fused MHA + FFN layer
        outs.append(x)
    xcat = jnp.concatenate(outs, axis=-1)                       # (B, T', d*num_blocks)
    xout = pallas_layernorm(xcat, params["after_g"], params["after_b"], eps=1e-12)
    return xout, sub_masks


# ------------------------------ parameters ---------------------------------

def init_params(key, input_size, d_model, heads, linear_units, num_blocks):
    F1 = (input_size - 3) // 2 + 1
    F2 = (F1 - 3) // 2 + 1
    dk = d_model // heads
    keys = iter(jax.random.split(key, 256))

    def nrm(shape, scale=0.1):
        return jax.random.normal(next(keys), shape, jnp.float32) * scale

    bf = lambda a: a.astype(jnp.bfloat16)   # MXU matmul weights stored bf16

    params = {
        "conv1_w": bf(nrm((1 * 3 * 3, d_model))),        # PyTorch (O,1,3,3) -> (9, O)
        "conv1_b": nrm((d_model,)),
        "conv2_w": bf(nrm((d_model * 3 * 3, d_model))),  # PyTorch (O,C,3,3) -> (C*9, O)
        "conv2_b": nrm((d_model,)),
        "out_w": bf(nrm((d_model * F2, d_model))),
        "out_b": nrm((d_model,)),
        "after_g": jnp.ones((d_model * num_blocks,), jnp.float32),
        "after_b": jnp.zeros((d_model * num_blocks,), jnp.float32),
        "layers": [],
    }
    for _ in range(num_blocks):
        wq, bq = nrm((d_model, d_model)), nrm((d_model,))
        wk, bk = nrm((d_model, d_model)), nrm((d_model,))
        wv, bv = nrm((d_model, d_model)), nrm((d_model,))
        wo, bo = nrm((d_model, d_model)), nrm((d_model,))
        # per-head packed QKV layout (H, D, 3*dk): one lane-denser matmul per head, no
        # in-kernel lane splitting/reshapes; out-proj (H, dk, D) folds per head with N=D.
        wq3 = wq.reshape(d_model, heads, dk)
        wk3 = wk.reshape(d_model, heads, dk)
        wv3 = wv.reshape(d_model, heads, dk)
        wqkv_h = jnp.concatenate([wq3, wk3, wv3], axis=-1).transpose(1, 0, 2)
        bqkv_h = jnp.concatenate([bq.reshape(heads, 1, dk),
                                  bk.reshape(heads, 1, dk),
                                  bv.reshape(heads, 1, dk)], axis=-1)
        lp = {
            "ln1_g": jnp.ones((d_model,), jnp.float32),
            "ln1_b": jnp.zeros((d_model,), jnp.float32),
            "ln2_g": jnp.ones((d_model,), jnp.float32),
            "ln2_b": jnp.zeros((d_model,), jnp.float32),
            "wqkv_h": bf(wqkv_h),                        # (H, D, 3*dk) bf16
            "bqkv_h": bqkv_h,                            # (H, 1, 3*dk) f32
            "wo_h": bf(wo.reshape(heads, dk, d_model)),  # (H, dk, D) bf16
            "bo": bo,
            "w1": bf(nrm((d_model, linear_units))), "b1": nrm((linear_units,)),
            "w2": bf(nrm((linear_units, d_model))), "b2": nrm((d_model,)),
        }
        params["layers"].append(lp)
    return params


# --------------------------------- main -------------------------------------

if __name__ == "__main__":
    key = jax.random.PRNGKey(0)
    k_x, k_p = jax.random.split(key)

    # small but shape-consistent config
    B, T, input_size = 2, 36, 20          # -> subsampled T' = 8, freq F2 = 4
    d_model, heads, linear_units, num_blocks = 32, 4, 64, 2

    xs = jax.random.normal(k_x, (B, T, input_size), jnp.float32)
    xs_lens = jnp.array([36, 29], jnp.int32)

    params = init_params(k_p, input_size, d_model, heads, linear_units, num_blocks)

    fwd = jax.jit(functools.partial(base_encoder_forward, d_model=d_model, heads=heads))
    out, masks = fwd(params, xs, xs_lens)
    jax.block_until_ready(out)
    jax.block_until_ready(masks)

    assert out.shape == (B, 8, d_model * num_blocks), out.shape
    assert masks.shape == (B, 1, 8), masks.shape
    assert bool(jnp.all(jnp.isfinite(out))), "non-finite output"
    print("KERNEL_OK")
</pallas_src>

<mosaic_0001>
module attributes {stable_mosaic.version = 11 : i64} {
  func.func @_linear_kernel(%arg0: i32, %arg1: memref<312x9xbf16, #tpu.memory_space<vmem>>, %arg2: memref<9x32xbf16, #tpu.memory_space<vmem>>, %arg3: memref<1x32xf32, #tpu.memory_space<vmem>>, %arg4: memref<312x32xbf16, #tpu.memory_space<vmem>>) attributes {dimension_semantics = [#tpu.dimension_semantics<parallel>], iteration_bounds = array<i64: 1>, scalar_prefetch = 0 : i64, scratch_operands = 0 : i64, tpu.core_type = #tpu.core_type<tc>, window_params = [{transform_indices = @transform_0, window_bounds = array<i64: 312, 9>}, {pipeline_mode = #tpu.pipeline_mode<synchronous>, transform_indices = @transform_1, window_bounds = array<i64: 9, 32>}, {pipeline_mode = #tpu.pipeline_mode<synchronous>, transform_indices = @transform_2, window_bounds = array<i64: 1, 32>}, {transform_indices = @transform_3, window_bounds = array<i64: 312, 32>}]} {
    %c0 = arith.constant 0 : index
    %c0_0 = arith.constant 0 : index
    %0 = vector.load %arg1[%c0, %c0_0] : memref<312x9xbf16, #tpu.memory_space<vmem>>, vector<312x9xbf16>
    %c0_1 = arith.constant 0 : index
    %c0_2 = arith.constant 0 : index
    %1 = vector.load %arg2[%c0_1, %c0_2] : memref<9x32xbf16, #tpu.memory_space<vmem>>, vector<9x32xbf16>
    %cst = arith.constant dense<0.000000e+00> : vector<312x32xf32>
    %2 = tpu.matmul %0, %1, %cst {dimension_numbers = #tpu.dot_dimension_numbers<[1], [0], [0], [1], [0, 0, 1, 1], [], []>} : vector<312x9xbf16>, vector<9x32xbf16>, vector<312x32xf32> -> vector<312x32xf32>
    %c0_3 = arith.constant 0 : index
    %c0_4 = arith.constant 0 : index
    %3 = vector.load %arg3[%c0_3, %c0_4] : memref<1x32xf32, #tpu.memory_space<vmem>>, vector<1x32xf32>
    %4 = vector.broadcast %3 : vector<1x32xf32> to vector<312x32xf32>
    %5 = arith.addf %2, %4 : vector<312x32xf32>
    %cst_5 = arith.constant 0.000000e+00 : f32
    %6 = vector.broadcast %cst_5 : f32 to vector<312x32xf32>
    %7 = arith.maximumf %5, %6 : vector<312x32xf32>
    %8 = arith.truncf %7 : vector<312x32xf32> to vector<312x32xbf16>
    %c0_6 = arith.constant 0 : index
    %c0_7 = arith.constant 0 : index
    %9 = vector.load %arg4[%c0_6, %c0_7] : memref<312x32xbf16, #tpu.memory_space<vmem>>, vector<312x32xbf16>
    tpu.vector_store %arg4[%c0_6, %c0_7], %8 {strides = array<i32>} : memref<312x32xbf16, #tpu.memory_space<vmem>>, vector<312x32xbf16>,
    return
  }
  func.func @transform_0(%arg0: i32) -> (i32, i32) {
    %c0_i32 = arith.constant 0 : i32
    %c0_i32_0 = arith.constant 0 : i32
    return %arg0, %c0_i32 : i32, i32
  }
  func.func @transform_1(%arg0: i32) -> (i32, i32) {
    %c0_i32 = arith.constant 0 : i32
    %c0_i32_0 = arith.constant 0 : i32
    %c0_i32_1 = arith.constant 0 : i32
    return %c0_i32, %c0_i32_0 : i32, i32
  }
  func.func @transform_2(%arg0: i32) -> (i32, i32) {
    %c0_i32 = arith.constant 0 : i32
    %c0_i32_0 = arith.constant 0 : i32
    %c0_i32_1 = arith.constant 0 : i32
    return %c0_i32, %c0_i32_0 : i32, i32
  }
  func.func @transform_3(%arg0: i32) -> (i32, i32) {
    %c0_i32 = arith.constant 0 : i32
    %c0_i32_0 = arith.constant 0 : i32
    return %arg0, %c0_i32 : i32, i32
  }
}

module attributes {stable_mosaic.version = 11 : i64} {
  func.func @_linear_kernel(%arg0: i32, %arg1: memref<64x288xbf16, #tpu.memory_space<vmem>>, %arg2: memref<288x32xbf16, #tpu.memory_space<vmem>>, %arg3: memref<1x32xf32, #tpu.memory_space<vmem>>, %arg4: memref<64x32xbf16, #tpu.memory_space<vmem>>) attributes {dimension_semantics = [#tpu.dimension_semantics<parallel>], iteration_bounds = array<i64: 1>, scalar_prefetch = 0 : i64, scratch_operands = 0 : i64, tpu.core_type = #tpu.core_type<tc>, window_params = [{transform_indices = @transform_0, window_bounds = array<i64: 64, 288>}, {pipeline_mode = #tpu.pipeline_mode<synchronous>, transform_indices = @transform_1, window_bounds = array<i64: 288, 32>}, {pipeline_mode = #tpu.pipeline_mode<synchronous>, transform_indices = @transform_2, window_bounds = array<i64: 1, 32>}, {transform_indices = @transform_3, window_bounds = array<i64: 64, 32>}]} {
    %c0 = arith.constant 0 : index
    %c0_0 = arith.constant 0 : index
    %0 = vector.load %arg1[%c0, %c0_0] : memref<64x288xbf16, #tpu.memory_space<vmem>>, vector<64x288xbf16>
    %c0_1 = arith.constant 0 : index
    %c0_2 = arith.constant 0 : index
    %1 = vector.load %arg2[%c0_1, %c0_2] : memref<288x32xbf16, #tpu.memory_space<vmem>>, vector<288x32xbf16>
    %cst = arith.constant dense<0.000000e+00> : vector<64x32xf32>
    %2 = tpu.matmul %0, %1, %cst {dimension_numbers = #tpu.dot_dimension_numbers<[1], [0], [0], [1], [0, 0, 1, 1], [], []>} : vector<64x288xbf16>, vector<288x32xbf16>, vector<64x32xf32> -> vector<64x32xf32>
    %c0_3 = arith.constant 0 : index
    %c0_4 = arith.constant 0 : index
    %3 = vector.load %arg3[%c0_3, %c0_4] : memref<1x32xf32, #tpu.memory_space<vmem>>, vector<1x32xf32>
    %4 = vector.broadcast %3 : vector<1x32xf32> to vector<64x32xf32>
    %5 = arith.addf %2, %4 : vector<64x32xf32>
    %cst_5 = arith.constant 0.000000e+00 : f32
    %6 = vector.broadcast %cst_5 : f32 to vector<64x32xf32>
    %7 = arith.maximumf %5, %6 : vector<64x32xf32>
    %8 = arith.truncf %7 : vector<64x32xf32> to vector<64x32xbf16>
    %c0_6 = arith.constant 0 : index
    %c0_7 = arith.constant 0 : index
    %9 = vector.load %arg4[%c0_6, %c0_7] : memref<64x32xbf16, #tpu.memory_space<vmem>>, vector<64x32xbf16>
    tpu.vector_store %arg4[%c0_6, %c0_7], %8 {strides = array<i32>} : memref<64x32xbf16, #tpu.memory_space<vmem>>, vector<64x32xbf16>,
    return
  }
  func.func @transform_0(%arg0: i32) -> (i32, i32) {
    %c0_i32 = arith.constant 0 : i32
    %c0_i32_0 = arith.constant 0 : i32
    return %arg0, %c0_i32 : i32, i32
  }
  func.func @transform_1(%arg0: i32) -> (i32, i32) {
    %c0_i32 = arith.constant 0 : i32
    %c0_i32_0 = arith.constant 0 : i32
    %c0_i32_1 = arith.constant 0 : i32
    return %c0_i32, %c0_i32_0 : i32, i32
  }
  func.func @transform_2(%arg0: i32) -> (i32, i32) {
    %c0_i32 = arith.constant 0 : i32
    %c0_i32_0 = arith.constant 0 : i32
    %c0_i32_1 = arith.constant 0 : i32
    return %c0_i32, %c0_i32_0 : i32, i32
  }
  func.func @transform_3(%arg0: i32) -> (i32, i32) {
    %c0_i32 = arith.constant 0 : i32
    %c0_i32_0 = arith.constant 0 : i32
    return %arg0, %c0_i32 : i32, i32
  }
}

module attributes {stable_mosaic.version = 11 : i64} {
  func.func @_proj_posenc_kernel(%arg0: i32, %arg1: memref<1x8x128xbf16, #tpu.memory_space<vmem>>, %arg2: memref<128x32xbf16, #tpu.memory_space<vmem>>, %arg3: memref<1x32xf32, #tpu.memory_space<vmem>>, %arg4: memref<8x32xf32, #tpu.memory_space<vmem>>, %arg5: memref<1x8x32xf32, #tpu.memory_space<vmem>>) attributes {dimension_semantics = [#tpu.dimension_semantics<parallel>], iteration_bounds = array<i64: 2>, scalar_prefetch = 0 : i64, scratch_operands = 0 : i64, tpu.core_type = #tpu.core_type<tc>, window_params = [{transform_indices = @transform_0, window_bounds = array<i64: 1, 8, 128>}, {pipeline_mode = #tpu.pipeline_mode<synchronous>, transform_indices = @transform_1, window_bounds = array<i64: 128, 32>}, {pipeline_mode = #tpu.pipeline_mode<synchronous>, transform_indices = @transform_2, window_bounds = array<i64: 1, 32>}, {pipeline_mode = #tpu.pipeline_mode<synchronous>, transform_indices = @transform_3, window_bounds = array<i64: 8, 32>}, {transform_indices = @transform_4, window_bounds = array<i64: 1, 8, 32>}]} {
    %c0 = arith.constant 0 : index
    %c0_0 = arith.constant 0 : index
    %c0_1 = arith.constant 0 : index
    %0 = vector.load %arg1[%c0, %c0_0, %c0_1] : memref<1x8x128xbf16, #tpu.memory_space<vmem>>, vector<1x8x128xbf16>
    %1 = vector.shape_cast %0 : vector<1x8x128xbf16> to vector<8x128xbf16>
    %c0_2 = arith.constant 0 : index
    %c0_3 = arith.constant 0 : index
    %2 = vector.load %arg2[%c0_2, %c0_3] : memref<128x32xbf16, #tpu.memory_space<vmem>>, vector<128x32xbf16>
    %cst = arith.constant dense<0.000000e+00> : vector<8x32xf32>
    %3 = tpu.matmul %1, %2, %cst {dimension_numbers = #tpu.dot_dimension_numbers<[1], [0], [0], [1], [0, 0, 1, 1], [], []>} : vector<8x128xbf16>, vector<128x32xbf16>, vector<8x32xf32> -> vector<8x32xf32>
    %c0_4 = arith.constant 0 : index
    %c0_5 = arith.constant 0 : index
    %4 = vector.load %arg3[%c0_4, %c0_5] : memref<1x32xf32, #tpu.memory_space<vmem>>, vector<1x32xf32>
    %5 = vector.broadcast %4 : vector<1x32xf32> to vector<8x32xf32>
    %6 = arith.addf %3, %5 : vector<8x32xf32>
    %cst_6 = arith.constant 5.65685415 : f32
    %7 = vector.broadcast %cst_6 : f32 to vector<8x32xf32>
    %8 = arith.mulf %6, %7 : vector<8x32xf32>
    %c0_7 = arith.constant 0 : index
    %c0_8 = arith.constant 0 : index
    %9 = vector.load %arg4[%c0_7, %c0_8] : memref<8x32xf32, #tpu.memory_space<vmem>>, vector<8x32xf32>
    %10 = arith.addf %8, %9 : vector<8x32xf32>
    %c0_9 = arith.constant 0 : index
    %c0_10 = arith.constant 0 : index
    %c0_11 = arith.constant 0 : index
    %11 = vector.load %arg5[%c0_9, %c0_10, %c0_11] : memref<1x8x32xf32, #tpu.memory_space<vmem>>, vector<1x8x32xf32>
    %12 = vector.shape_cast %11 : vector<1x8x32xf32> to vector<8x32xf32>
    %13 = vector.shape_cast %10 : vector<8x32xf32> to vector<1x8x32xf32>
    tpu.vector_store %arg5[%c0_9, %c0_10, %c0_11], %13 {strides = array<i32>} : memref<1x8x32xf32, #tpu.memory_space<vmem>>, vector<1x8x32xf32>,
    return
  }
  func.func @transform_0(%arg0: i32) -> (i32, i32, i32) {
    %c0_i32 = arith.constant 0 : i32
    %c0_i32_0 = arith.constant 0 : i32
    %c0_i32_1 = arith.constant 0 : i32
    return %arg0, %c0_i32, %c0_i32_0 : i32, i32, i32
  }
  func.func @transform_1(%arg0: i32) -> (i32, i32) {
    %c0_i32 = arith.constant 0 : i32
    %c0_i32_0 = arith.constant 0 : i32
    %c0_i32_1 = arith.constant 0 : i32
    return %c0_i32, %c0_i32_0 : i32, i32
  }
  func.func @transform_2(%arg0: i32) -> (i32, i32) {
    %c0_i32 = arith.constant 0 : i32
    %c0_i32_0 = arith.constant 0 : i32
    %c0_i32_1 = arith.constant 0 : i32
    return %c0_i32, %c0_i32_0 : i32, i32
  }
  func.func @transform_3(%arg0: i32) -> (i32, i32) {
    %c0_i32 = arith.constant 0 : i32
    %c0_i32_0 = arith.constant 0 : i32
    %c0_i32_1 = arith.constant 0 : i32
    return %c0_i32, %c0_i32_0 : i32, i32
  }
  func.func @transform_4(%arg0: i32) -> (i32, i32, i32) {
    %c0_i32 = arith.constant 0 : i32
    %c0_i32_0 = arith.constant 0 : i32
    %c0_i32_1 = arith.constant 0 : i32
    return %arg0, %c0_i32, %c0_i32_0 : i32, i32, i32
  }
}

module attributes {stable_mosaic.version = 11 : i64} {
  func.func @_encoder_layer_kernel(%arg0: i32, %arg1: memref<2xi32, #tpu.memory_space<smem>>, %arg2: memref<1x8x32xf32, #tpu.memory_space<vmem>>, %arg3: memref<1x32xf32, #tpu.memory_space<vmem>>, %arg4: memref<1x32xf32, #tpu.memory_space<vmem>>, %arg5: memref<4x32x24xbf16, #tpu.memory_space<vmem>>, %arg6: memref<4x1x24xf32, #tpu.memory_space<vmem>>, %arg7: memref<4x8x32xbf16, #tpu.memory_space<vmem>>, %arg8: memref<1x32xf32, #tpu.memory_space<vmem>>, %arg9: memref<1x32xf32, #tpu.memory_space<vmem>>, %arg10: memref<1x32xf32, #tpu.memory_space<vmem>>, %arg11: memref<32x64xbf16, #tpu.memory_space<vmem>>, %arg12: memref<1x64xf32, #tpu.memory_space<vmem>>, %arg13: memref<64x32xbf16, #tpu.memory_space<vmem>>, %arg14: memref<1x32xf32, #tpu.memory_space<vmem>>, %arg15: memref<1x8x32xf32, #tpu.memory_space<vmem>>, %arg16: memref<8x32xf32, #tpu.memory_space<vmem>>) attributes {dimension_semantics = [#tpu.dimension_semantics<parallel>], iteration_bounds = array<i64: 2>, scalar_prefetch = 1 : i64, scratch_operands = 1 : i64, tpu.core_type = #tpu.core_type<tc>, window_params = [{transform_indices = @transform_0, window_bounds = array<i64: 1, 8, 32>}, {pipeline_mode = #tpu.pipeline_mode<synchronous>, transform_indices = @transform_1, window_bounds = array<i64: 1, 32>}, {pipeline_mode = #tpu.pipeline_mode<synchronous>, transform_indices = @transform_2, window_bounds = array<i64: 1, 32>}, {pipeline_mode = #tpu.pipeline_mode<synchronous>, transform_indices = @transform_3, window_bounds = array<i64: 4, 32, 24>}, {pipeline_mode = #tpu.pipeline_mode<synchronous>, transform_indices = @transform_4, window_bounds = array<i64: 4, 1, 24>}, {pipeline_mode = #tpu.pipeline_mode<synchronous>, transform_indices = @transform_5, window_bounds = array<i64: 4, 8, 32>}, {pipeline_mode = #tpu.pipeline_mode<synchronous>, transform_indices = @transform_6, window_bounds = array<i64: 1, 32>}, {pipeline_mode = #tpu.pipeline_mode<synchronous>, transform_indices = @transform_7, window_bounds = array<i64: 1, 32>}, {pipeline_mode = #tpu.pipeline_mode<synchronous>, transform_indices = @transform_8, window_bounds = array<i64: 1, 32>}, {pipeline_mode = #tpu.pipeline_mode<synchronous>, transform_indices = @transform_9, window_bounds = array<i64: 32, 64>}, {pipeline_mode = #tpu.pipeline_mode<synchronous>, transform_indices = @transform_10, window_bounds = array<i64: 1, 64>}, {pipeline_mode = #tpu.pipeline_mode<synchronous>, transform_indices = @transform_11, window_bounds = array<i64: 64, 32>}, {pipeline_mode = #tpu.pipeline_mode<synchronous>, transform_indices = @transform_12, window_bounds = array<i64: 1, 32>}, {transform_indices = @transform_13, window_bounds = array<i64: 1, 8, 32>}]} {
    %c0 = arith.constant 0 : index
    %c0_0 = arith.constant 0 : index
    %c0_1 = arith.constant 0 : index
    %0 = vector.load %arg2[%c0, %c0_0, %c0_1] : memref<1x8x32xf32, #tpu.memory_space<vmem>>, vector<1x8x32xf32>
    %1 = vector.shape_cast %0 : vector<1x8x32xf32> to vector<8x32xf32>
    %cst = arith.constant dense<0.000000e+00> : vector<8xf32>
    %2 = vector.multi_reduction <add>, %1, %cst [1] : vector<8x32xf32> to vector<8xf32>
    %3 = vector.shape_cast %2 : vector<8xf32> to vector<8x1xf32>
    %cst_2 = arith.constant 3.200000e+01 : f32
    %4 = vector.broadcast %cst_2 : f32 to vector<8x1xf32>
    %5 = arith.divf %3, %4 : vector<8x1xf32>
    %6 = vector.broadcast %5 : vector<8x1xf32> to vector<8x32xf32>
    %7 = arith.subf %1, %6 : vector<8x32xf32>
    %8 = arith.mulf %7, %7 : vector<8x32xf32>
    %cst_3 = arith.constant dense<0.000000e+00> : vector<8xf32>
    %9 = vector.multi_reduction <add>, %8, %cst_3 [1] : vector<8x32xf32> to vector<8xf32>
    %10 = vector.shape_cast %9 : vector<8xf32> to vector<8x1xf32>
    %cst_4 = arith.constant 3.200000e+01 : f32
    %11 = vector.broadcast %cst_4 : f32 to vector<8x1xf32>
    %12 = arith.divf %10, %11 : vector<8x1xf32>
    %13 = vector.broadcast %5 : vector<8x1xf32> to vector<8x32xf32>
    %14 = arith.subf %1, %13 : vector<8x32xf32>
    %cst_5 = arith.constant 9.99999996E-13 : f32
    %15 = vector.broadcast %cst_5 : f32 to vector<8x1xf32>
    %16 = arith.addf %12, %15 : vector<8x1xf32>
    %17 = math.rsqrt %16 : vector<8x1xf32>
    %18 = vector.broadcast %17 : vector<8x1xf32> to vector<8x32xf32>
    %19 = arith.mulf %14, %18 : vector<8x32xf32>
    %c0_6 = arith.constant 0 : index
    %c0_7 = arith.constant 0 : index
    %20 = vector.load %arg3[%c0_6, %c0_7] : memref<1x32xf32, #tpu.memory_space<vmem>>, vector<1x32xf32>
    %21 = vector.broadcast %20 : vector<1x32xf32> to vector<8x32xf32>
    %22 = arith.mulf %19, %21 : vector<8x32xf32>
    %c0_8 = arith.constant 0 : index
    %c0_9 = arith.constant 0 : index
    %23 = vector.load %arg4[%c0_8, %c0_9] : memref<1x32xf32, #tpu.memory_space<vmem>>, vector<1x32xf32>
    %24 = vector.broadcast %23 : vector<1x32xf32> to vector<8x32xf32>
    %25 = arith.addf %22, %24 : vector<8x32xf32>
    %26 = arith.truncf %25 : vector<8x32xf32> to vector<8x32xbf16>
    %27 = tpu.iota {dimensions = array<i32: 1>} : vector<1x8xi32>
    %28 = arith.index_cast %arg0 : i32 to index
    %29 = memref.load %arg1[%28] : memref<2xi32, #tpu.memory_space<smem>>
    %30 = vector.broadcast %29 : i32 to vector<1x8xi32>
    %31 = arith.cmpi slt, %27, %30 : vector<1x8xi32>
    %cst_10 = arith.constant 0.000000e+00 : f32
    %cst_11 = arith.constant -1.000000e+09 : f32
    %32 = vector.broadcast %cst_10 : f32 to vector<1x8xf32>
    %33 = vector.broadcast %cst_11 : f32 to vector<1x8xf32>
    %34 = arith.select %31, %32, %33 : vector<1x8xi1>, vector<1x8xf32>
    %cst_12 = arith.constant 0.000000e+00 : f32
    %35 = vector.broadcast %cst_12 : f32 to vector<8x32xf32>
    %c0_13 = arith.constant 0 : index
    %c0_14 = arith.constant 0 : index
    %36 = vector.load %arg16[%c0_13, %c0_14] : memref<8x32xf32, #tpu.memory_space<vmem>>, vector<8x32xf32>
    tpu.vector_store %arg16[%c0_13, %c0_14], %35 {strides = array<i32>} : memref<8x32xf32, #tpu.memory_space<vmem>>, vector<8x32xf32>,
    %c0_i32 = arith.constant 0 : i32
    %c4_i32 = arith.constant 4 : i32
    %37 = arith.addi %c0_i32, %c4_i32 : i32
    %c1_i32 = arith.constant 1 : i32
    scf.for %arg17 = %c0_i32 to %37 step %c1_i32  : i32 {
      %c1_i32_43 = arith.constant 1 : i32
      %85 = arith.muli %arg17, %c1_i32_43 : i32
      %c0_i32_44 = arith.constant 0 : i32
      %86 = arith.addi %c0_i32_44, %85 : i32
      %87 = arith.index_cast %86 : i32 to index
      %c0_45 = arith.constant 0 : index
      %c0_46 = arith.constant 0 : index
      %88 = vector.load %arg5[%87, %c0_45, %c0_46] : memref<4x32x24xbf16, #tpu.memory_space<vmem>>, vector<1x32x24xbf16>
      %89 = vector.shape_cast %88 : vector<1x32x24xbf16> to vector<32x24xbf16>
      %cst_47 = arith.constant dense<0.000000e+00> : vector<8x24xf32>
      %90 = tpu.matmul %26, %89, %cst_47 {dimension_numbers = #tpu.dot_dimension_numbers<[1], [0], [0], [1], [0, 0, 1, 1], [], []>} : vector<8x32xbf16>, vector<32x24xbf16>, vector<8x24xf32> -> vector<8x24xf32>
      %91 = arith.index_cast %86 : i32 to index
      %c0_48 = arith.constant 0 : index
      %c0_49 = arith.constant 0 : index
      %92 = vector.load %arg6[%91, %c0_48, %c0_49] : memref<4x1x24xf32, #tpu.memory_space<vmem>>, vector<1x1x24xf32>
      %93 = vector.shape_cast %92 : vector<1x1x24xf32> to vector<1x24xf32>
      %94 = vector.broadcast %93 : vector<1x24xf32> to vector<8x24xf32>
      %95 = arith.addf %90, %94 : vector<8x24xf32>
      %96 = vector.extract_strided_slice %95 {offsets = [0, 0], sizes = [8, 8], strides = [1, 1]} : vector<8x24xf32> to vector<8x8xf32>
      %97 = vector.extract_strided_slice %95 {offsets = [0, 8], sizes = [8, 8], strides = [1, 1]} : vector<8x24xf32> to vector<8x8xf32>
      %98 = vector.extract_strided_slice %95 {offsets = [0, 16], sizes = [8, 8], strides = [1, 1]} : vector<8x24xf32> to vector<8x8xf32>
      %99 = arith.truncf %96 : vector<8x8xf32> to vector<8x8xbf16>
      %100 = arith.truncf %97 : vector<8x8xf32> to vector<8x8xbf16>
      %cst_50 = arith.constant dense<0.000000e+00> : vector<8x8xf32>
      %101 = tpu.matmul %99, %100, %cst_50 {dimension_numbers = #tpu.dot_dimension_numbers<[1], [1], [0], [0], [0, 0, 1, 0], [], []>} : vector<8x8xbf16>, vector<8x8xbf16>, vector<8x8xf32> -> vector<8x8xf32>
      %cst_51 = arith.constant 0.353553385 : f32
      %102 = vector.broadcast %cst_51 : f32 to vector<8x8xf32>
      %103 = arith.mulf %101, %102 : vector<8x8xf32>
      %104 = vector.broadcast %34 : vector<1x8xf32> to vector<8x8xf32>
      %105 = arith.addf %103, %104 : vector<8x8xf32>
      %cst_52 = arith.constant dense<0xFF800000> : vector<8xf32>
      %106 = vector.multi_reduction <maximumf>, %105, %cst_52 [1] : vector<8x8xf32> to vector<8xf32>
      %107 = vector.shape_cast %106 : vector<8xf32> to vector<8x1xf32>
      %108 = vector.broadcast %107 : vector<8x1xf32> to vector<8x8xf32>
      %109 = arith.subf %105, %108 : vector<8x8xf32>
      %110 = math.exp %109 : vector<8x8xf32>
      %cst_53 = arith.constant dense<0.000000e+00> : vector<8xf32>
      %111 = vector.multi_reduction <add>, %110, %cst_53 [1] : vector<8x8xf32> to vector<8xf32>
      %112 = vector.shape_cast %111 : vector<8xf32> to vector<8x1xf32>
      %113 = tpu.reciprocal %112 {approx = true} : vector<8x1xf32> -> vector<8x1xf32>
      %114 = vector.broadcast %113 : vector<8x1xf32> to vector<8x8xf32>
      %115 = arith.mulf %110, %114 : vector<8x8xf32>
      %116 = arith.truncf %115 : vector<8x8xf32> to vector<8x8xbf16>
      %117 = arith.truncf %98 : vector<8x8xf32> to vector<8x8xbf16>
      %cst_54 = arith.constant dense<0.000000e+00> : vector<8x8xf32>
      %118 = tpu.matmul %116, %117, %cst_54 {dimension_numbers = #tpu.dot_dimension_numbers<[1], [0], [0], [1], [0, 0, 1, 1], [], []>} : vector<8x8xbf16>, vector<8x8xbf16>, vector<8x8xf32> -> vector<8x8xf32>
      %c0_55 = arith.constant 0 : index
      %c0_56 = arith.constant 0 : index
      %119 = vector.load %arg16[%c0_55, %c0_56] : memref<8x32xf32, #tpu.memory_space<vmem>>, vector<8x32xf32>
      %120 = arith.truncf %118 : vector<8x8xf32> to vector<8x8xbf16>
      %121 = arith.index_cast %86 : i32 to index
      %c0_57 = arith.constant 0 : index
      %c0_58 = arith.constant 0 : index
      %122 = vector.load %arg7[%121, %c0_57, %c0_58] : memref<4x8x32xbf16, #tpu.memory_space<vmem>>, vector<1x8x32xbf16>
      %123 = vector.shape_cast %122 : vector<1x8x32xbf16> to vector<8x32xbf16>
      %cst_59 = arith.constant dense<0.000000e+00> : vector<8x32xf32>
      %124 = tpu.matmul %120, %123, %cst_59 {dimension_numbers = #tpu.dot_dimension_numbers<[1], [0], [0], [1], [0, 0, 1, 1], [], []>} : vector<8x8xbf16>, vector<8x32xbf16>, vector<8x32xf32> -> vector<8x32xf32>
      %125 = arith.addf %119, %124 : vector<8x32xf32>
      %c0_60 = arith.constant 0 : index
      %c0_61 = arith.constant 0 : index
      %126 = vector.load %arg16[%c0_60, %c0_61] : memref<8x32xf32, #tpu.memory_space<vmem>>, vector<8x32xf32>
      tpu.vector_store %arg16[%c0_60, %c0_61], %125 {strides = array<i32>} : memref<8x32xf32, #tpu.memory_space<vmem>>, vector<8x32xf32>,
    }
    %c4_i32_15 = arith.constant 4 : i32
    %c0_16 = arith.constant 0 : index
    %c0_17 = arith.constant 0 : index
    %38 = vector.load %arg16[%c0_16, %c0_17] : memref<8x32xf32, #tpu.memory_space<vmem>>, vector<8x32xf32>
    %39 = arith.addf %1, %38 : vector<8x32xf32>
    %c0_18 = arith.constant 0 : index
    %c0_19 = arith.constant 0 : index
    %40 = vector.load %arg8[%c0_18, %c0_19] : memref<1x32xf32, #tpu.memory_space<vmem>>, vector<1x32xf32>
    %41 = vector.broadcast %40 : vector<1x32xf32> to vector<8x32xf32>
    %42 = arith.addf %39, %41 : vector<8x32xf32>
    %cst_20 = arith.constant dense<0.000000e+00> : vector<8xf32>
    %43 = vector.multi_reduction <add>, %42, %cst_20 [1] : vector<8x32xf32> to vector<8xf32>
    %44 = vector.shape_cast %43 : vector<8xf32> to vector<8x1xf32>
    %cst_21 = arith.constant 3.200000e+01 : f32
    %45 = vector.broadcast %cst_21 : f32 to vector<8x1xf32>
    %46 = arith.divf %44, %45 : vector<8x1xf32>
    %47 = vector.broadcast %46 : vector<8x1xf32> to vector<8x32xf32>
    %48 = arith.subf %42, %47 : vector<8x32xf32>
    %49 = arith.mulf %48, %48 : vector<8x32xf32>
    %cst_22 = arith.constant dense<0.000000e+00> : vector<8xf32>
    %50 = vector.multi_reduction <add>, %49, %cst_22 [1] : vector<8x32xf32> to vector<8xf32>
    %51 = vector.shape_cast %50 : vector<8xf32> to vector<8x1xf32>
    %cst_23 = arith.constant 3.200000e+01 : f32
    %52 = vector.broadcast %cst_23 : f32 to vector<8x1xf32>
    %53 = arith.divf %51, %52 : vector<8x1xf32>
    %54 = vector.broadcast %46 : vector<8x1xf32> to vector<8x32xf32>
    %55 = arith.subf %42, %54 : vector<8x32xf32>
    %cst_24 = arith.constant 9.99999996E-13 : f32
    %56 = vector.broadcast %cst_24 : f32 to vector<8x1xf32>
    %57 = arith.addf %53, %56 : vector<8x1xf32>
    %58 = math.rsqrt %57 : vector<8x1xf32>
    %59 = vector.broadcast %58 : vector<8x1xf32> to vector<8x32xf32>
    %60 = arith.mulf %55, %59 : vector<8x32xf32>
    %c0_25 = arith.constant 0 : index
    %c0_26 = arith.constant 0 : index
    %61 = vector.load %arg9[%c0_25, %c0_26] : memref<1x32xf32, #tpu.memory_space<vmem>>, vector<1x32xf32>
    %62 = vector.broadcast %61 : vector<1x32xf32> to vector<8x32xf32>
    %63 = arith.mulf %60, %62 : vector<8x32xf32>
    %c0_27 = arith.constant 0 : index
    %c0_28 = arith.constant 0 : index
    %64 = vector.load %arg10[%c0_27, %c0_28] : memref<1x32xf32, #tpu.memory_space<vmem>>, vector<1x32xf32>
    %65 = vector.broadcast %64 : vector<1x32xf32> to vector<8x32xf32>
    %66 = arith.addf %63, %65 : vector<8x32xf32>
    %67 = arith.truncf %66 : vector<8x32xf32> to vector<8x32xbf16>
    %c0_29 = arith.constant 0 : index
    %c0_30 = arith.constant 0 : index
    %68 = vector.load %arg11[%c0_29, %c0_30] : memref<32x64xbf16, #tpu.memory_space<vmem>>, vector<32x64xbf16>
    %cst_31 = arith.constant dense<0.000000e+00> : vector<8x64xf32>
    %69 = tpu.matmul %67, %68, %cst_31 {dimension_numbers = #tpu.dot_dimension_numbers<[1], [0], [0], [1], [0, 0, 1, 1], [], []>} : vector<8x32xbf16>, vector<32x64xbf16>, vector<8x64xf32> -> vector<8x64xf32>
    %c0_32 = arith.constant 0 : index
    %c0_33 = arith.constant 0 : index
    %70 = vector.load %arg12[%c0_32, %c0_33] : memref<1x64xf32, #tpu.memory_space<vmem>>, vector<1x64xf32>
    %71 = vector.broadcast %70 : vector<1x64xf32> to vector<8x64xf32>
    %72 = arith.addf %69, %71 : vector<8x64xf32>
    %cst_34 = arith.constant 0.000000e+00 : f32
    %73 = vector.broadcast %cst_34 : f32 to vector<8x64xf32>
    %74 = arith.maximumf %72, %73 : vector<8x64xf32>
    %75 = arith.truncf %74 : vector<8x64xf32> to vector<8x64xbf16>
    %c0_35 = arith.constant 0 : index
    %c0_36 = arith.constant 0 : index
    %76 = vector.load %arg13[%c0_35, %c0_36] : memref<64x32xbf16, #tpu.memory_space<vmem>>, vector<64x32xbf16>
    %cst_37 = arith.constant dense<0.000000e+00> : vector<8x32xf32>
    %77 = tpu.matmul %75, %76, %cst_37 {dimension_numbers = #tpu.dot_dimension_numbers<[1], [0], [0], [1], [0, 0, 1, 1], [], []>} : vector<8x64xbf16>, vector<64x32xbf16>, vector<8x32xf32> -> vector<8x32xf32>
    %c0_38 = arith.constant 0 : index
    %c0_39 = arith.constant 0 : index
    %78 = vector.load %arg14[%c0_38, %c0_39] : memref<1x32xf32, #tpu.memory_space<vmem>>, vector<1x32xf32>
    %79 = vector.broadcast %78 : vector<1x32xf32> to vector<8x32xf32>
    %80 = arith.addf %77, %79 : vector<8x32xf32>
    %81 = arith.addf %42, %80 : vector<8x32xf32>
    %c0_40 = arith.constant 0 : index
    %c0_41 = arith.constant 0 : index
    %c0_42 = arith.constant 0 : index
    %82 = vector.load %arg15[%c0_40, %c0_41, %c0_42] : memref<1x8x32xf32, #tpu.memory_space<vmem>>, vector<1x8x32xf32>
    %83 = vector.shape_cast %82 : vector<1x8x32xf32> to vector<8x32xf32>
    %84 = vector.shape_cast %81 : vector<8x32xf32> to vector<1x8x32xf32>
    tpu.vector_store %arg15[%c0_40, %c0_41, %c0_42], %84 {strides = array<i32>} : memref<1x8x32xf32, #tpu.memory_space<vmem>>, vector<1x8x32xf32>,
    return
  }
  func.func @transform_0(%arg0: i32, %arg1: memref<2xi32, #tpu.memory_space<smem>>) -> (i32, i32, i32) {
    %c0_i32 = arith.constant 0 : i32
    %c0_i32_0 = arith.constant 0 : i32
    %c0_i32_1 = arith.constant 0 : i32
    return %arg0, %c0_i32, %c0_i32_0 : i32, i32, i32
  }
  func.func @transform_1(%arg0: i32, %arg1: memref<2xi32, #tpu.memory_space<smem>>) -> (i32, i32) {
    %c0_i32 = arith.constant 0 : i32
    %c0_i32_0 = arith.constant 0 : i32
    %c0_i32_1 = arith.constant 0 : i32
    return %c0_i32, %c0_i32_0 : i32, i32
  }
  func.func @transform_2(%arg0: i32, %arg1: memref<2xi32, #tpu.memory_space<smem>>) -> (i32, i32) {
    %c0_i32 = arith.constant 0 : i32
    %c0_i32_0 = arith.constant 0 : i32
    %c0_i32_1 = arith.constant 0 : i32
    return %c0_i32, %c0_i32_0 : i32, i32
  }
  func.func @transform_3(%arg0: i32, %arg1: memref<2xi32, #tpu.memory_space<smem>>) -> (i32, i32, i32) {
    %c0_i32 = arith.constant 0 : i32
    %c0_i32_0 = arith.constant 0 : i32
    %c0_i32_1 = arith.constant 0 : i32
    %c0_i32_2 = arith.constant 0 : i32
    return %c0_i32, %c0_i32_0, %c0_i32_1 : i32, i32, i32
  }
  func.func @transform_4(%arg0: i32, %arg1: memref<2xi32, #tpu.memory_space<smem>>) -> (i32, i32, i32) {
    %c0_i32 = arith.constant 0 : i32
    %c0_i32_0 = arith.constant 0 : i32
    %c0_i32_1 = arith.constant 0 : i32
    %c0_i32_2 = arith.constant 0 : i32
    return %c0_i32, %c0_i32_0, %c0_i32_1 : i32, i32, i32
  }
  func.func @transform_5(%arg0: i32, %arg1: memref<2xi32, #tpu.memory_space<smem>>) -> (i32, i32, i32) {
    %c0_i32 = arith.constant 0 : i32
    %c0_i32_0 = arith.constant 0 : i32
    %c0_i32_1 = arith.constant 0 : i32
    %c0_i32_2 = arith.constant 0 : i32
    return %c0_i32, %c0_i32_0, %c0_i32_1 : i32, i32, i32
  }
  func.func @transform_6(%arg0: i32, %arg1: memref<2xi32, #tpu.memory_space<smem>>) -> (i32, i32) {
    %c0_i32 = arith.constant 0 : i32
    %c0_i32_0 = arith.constant 0 : i32
    %c0_i32_1 = arith.constant 0 : i32
    return %c0_i32, %c0_i32_0 : i32, i32
  }
  func.func @transform_7(%arg0: i32, %arg1: memref<2xi32, #tpu.memory_space<smem>>) -> (i32, i32) {
    %c0_i32 = arith.constant 0 : i32
    %c0_i32_0 = arith.constant 0 : i32
    %c0_i32_1 = arith.constant 0 : i32
    return %c0_i32, %c0_i32_0 : i32, i32
  }
  func.func @transform_8(%arg0: i32, %arg1: memref<2xi32, #tpu.memory_space<smem>>) -> (i32, i32) {
    %c0_i32 = arith.constant 0 : i32
    %c0_i32_0 = arith.constant 0 : i32
    %c0_i32_1 = arith.constant 0 : i32
    return %c0_i32, %c0_i32_0 : i32, i32
  }
  func.func @transform_9(%arg0: i32, %arg1: memref<2xi32, #tpu.memory_space<smem>>) -> (i32, i32) {
    %c0_i32 = arith.constant 0 : i32
    %c0_i32_0 = arith.constant 0 : i32
    %c0_i32_1 = arith.constant 0 : i32
    return %c0_i32, %c0_i32_0 : i32, i32
  }
  func.func @transform_10(%arg0: i32, %arg1: memref<2xi32, #tpu.memory_space<smem>>) -> (i32, i32) {
    %c0_i32 = arith.constant 0 : i32
    %c0_i32_0 = arith.constant 0 : i32
    %c0_i32_1 = arith.constant 0 : i32
    return %c0_i32, %c0_i32_0 : i32, i32
  }
  func.func @transform_11(%arg0: i32, %arg1: memref<2xi32, #tpu.memory_space<smem>>) -> (i32, i32) {
    %c0_i32 = arith.constant 0 : i32
    %c0_i32_0 = arith.constant 0 : i32
    %c0_i32_1 = arith.constant 0 : i32
    return %c0_i32, %c0_i32_0 : i32, i32
  }
  func.func @transform_12(%arg0: i32, %arg1: memref<2xi32, #tpu.memory_space<smem>>) -> (i32, i32) {
    %c0_i32 = arith.constant 0 : i32
    %c0_i32_0 = arith.constant 0 : i32
    %c0_i32_1 = arith.constant 0 : i32
    return %c0_i32, %c0_i32_0 : i32, i32
  }
  func.func @transform_13(%arg0: i32, %arg1: memref<2xi32, #tpu.memory_space<smem>>) -> (i32, i32, i32) {
    %c0_i32 = arith.constant 0 : i32
    %c0_i32_0 = arith.constant 0 : i32
    %c0_i32_1 = arith.constant 0 : i32
    return %arg0, %c0_i32, %c0_i32_0 : i32, i32, i32
  }
}

module attributes {stable_mosaic.version = 11 : i64} {
  func.func @_layernorm_kernel(%arg0: i32, %arg1: memref<16x64xf32, #tpu.memory_space<vmem>>, %arg2: memref<1x64xf32, #tpu.memory_space<vmem>>, %arg3: memref<1x64xf32, #tpu.memory_space<vmem>>, %arg4: memref<16x64xf32, #tpu.memory_space<vmem>>) attributes {dimension_semantics = [#tpu.dimension_semantics<parallel>], iteration_bounds = array<i64: 1>, scalar_prefetch = 0 : i64, scratch_operands = 0 : i64, tpu.core_type = #tpu.core_type<tc>, window_params = [{transform_indices = @transform_0, window_bounds = array<i64: 16, 64>}, {pipeline_mode = #tpu.pipeline_mode<synchronous>, transform_indices = @transform_1, window_bounds = array<i64: 1, 64>}, {pipeline_mode = #tpu.pipeline_mode<synchronous>, transform_indices = @transform_2, window_bounds = array<i64: 1, 64>}, {transform_indices = @transform_3, window_bounds = array<i64: 16, 64>}]} {
    %c0 = arith.constant 0 : index
    %c0_0 = arith.constant 0 : index
    %0 = vector.load %arg1[%c0, %c0_0] : memref<16x64xf32, #tpu.memory_space<vmem>>, vector<16x64xf32>
    %cst = arith.constant dense<0.000000e+00> : vector<16xf32>
    %1 = vector.multi_reduction <add>, %0, %cst [1] : vector<16x64xf32> to vector<16xf32>
    %2 = vector.shape_cast %1 : vector<16xf32> to vector<16x1xf32>
    %cst_1 = arith.constant 6.400000e+01 : f32
    %3 = vector.broadcast %cst_1 : f32 to vector<16x1xf32>
    %4 = arith.divf %2, %3 : vector<16x1xf32>
    %5 = vector.broadcast %4 : vector<16x1xf32> to vector<16x64xf32>
    %6 = arith.subf %0, %5 : vector<16x64xf32>
    %7 = arith.mulf %6, %6 : vector<16x64xf32>
    %cst_2 = arith.constant dense<0.000000e+00> : vector<16xf32>
    %8 = vector.multi_reduction <add>, %7, %cst_2 [1] : vector<16x64xf32> to vector<16xf32>
    %9 = vector.shape_cast %8 : vector<16xf32> to vector<16x1xf32>
    %cst_3 = arith.constant 6.400000e+01 : f32
    %10 = vector.broadcast %cst_3 : f32 to vector<16x1xf32>
    %11 = arith.divf %9, %10 : vector<16x1xf32>
    %12 = vector.broadcast %4 : vector<16x1xf32> to vector<16x64xf32>
    %13 = arith.subf %0, %12 : vector<16x64xf32>
    %cst_4 = arith.constant 9.99999996E-13 : f32
    %14 = vector.broadcast %cst_4 : f32 to vector<16x1xf32>
    %15 = arith.addf %11, %14 : vector<16x1xf32>
    %16 = math.rsqrt %15 : vector<16x1xf32>
    %17 = vector.broadcast %16 : vector<16x1xf32> to vector<16x64xf32>
    %18 = arith.mulf %13, %17 : vector<16x64xf32>
    %c0_5 = arith.constant 0 : index
    %c0_6 = arith.constant 0 : index
    %19 = vector.load %arg2[%c0_5, %c0_6] : memref<1x64xf32, #tpu.memory_space<vmem>>, vector<1x64xf32>
    %20 = vector.broadcast %19 : vector<1x64xf32> to vector<16x64xf32>
    %21 = arith.mulf %18, %20 : vector<16x64xf32>
    %c0_7 = arith.constant 0 : index
    %c0_8 = arith.constant 0 : index
    %22 = vector.load %arg3[%c0_7, %c0_8] : memref<1x64xf32, #tpu.memory_space<vmem>>, vector<1x64xf32>
    %23 = vector.broadcast %22 : vector<1x64xf32> to vector<16x64xf32>
    %24 = arith.addf %21, %23 : vector<16x64xf32>
    %c0_9 = arith.constant 0 : index
    %c0_10 = arith.constant 0 : index
    %25 = vector.load %arg4[%c0_9, %c0_10] : memref<16x64xf32, #tpu.memory_space<vmem>>, vector<16x64xf32>
    tpu.vector_store %arg4[%c0_9, %c0_10], %24 {strides = array<i32>} : memref<16x64xf32, #tpu.memory_space<vmem>>, vector<16x64xf32>,
    return
  }
  func.func @transform_0(%arg0: i32) -> (i32, i32) {
    %c0_i32 = arith.constant 0 : i32
    %c0_i32_0 = arith.constant 0 : i32
    return %arg0, %c0_i32 : i32, i32
  }
  func.func @transform_1(%arg0: i32) -> (i32, i32) {
    %c0_i32 = arith.constant 0 : i32
    %c0_i32_0 = arith.constant 0 : i32
    %c0_i32_1 = arith.constant 0 : i32
    return %c0_i32, %c0_i32_0 : i32, i32
  }
  func.func @transform_2(%arg0: i32) -> (i32, i32) {
    %c0_i32 = arith.constant 0 : i32
    %c0_i32_0 = arith.constant 0 : i32
    %c0_i32_1 = arith.constant 0 : i32
    return %c0_i32, %c0_i32_0 : i32, i32
  }
  func.func @transform_3(%arg0: i32) -> (i32, i32) {
    %c0_i32 = arith.constant 0 : i32
    %c0_i32_0 = arith.constant 0 : i32
    return %arg0, %c0_i32 : i32, i32
  }
}

</mosaic_0001>

<llo_original>
// kernel: base_encoder_forward.6
$region0: #{base_encoder_forward.6}
  #allocation0 [shape = 'u32[]', space=smem, size = 0x4, offset = 0x4, fixed_abs, tag = 'smem constant byte address 0x4 - core index']
  #allocation1 [shape = 'u32[72,128]{1,0:T(1,128)}', space=vmem, size = 0x9000, scoped, tag = 'internal scratch']
  %s0 = inlined_call_operand.vmem [shape: bf16[306,9], index: 0, kind: input, shape index: {}]
  %s1 = inlined_call_operand.vmem [shape: bf16[9,32], index: 1, kind: input, shape index: {}]
  %s2 = inlined_call_operand.vmem [shape: f32[1,32], index: 2, kind: input, shape index: {}]
  %s3 = inlined_call_operand.vmem [shape: bf16[306,32], index: 3, kind: output, shape index: {}]
  %s4 = sld [smem:[#allocation0]]
  $region22: #{base_encoder_forward.6} parent=0
    _
  %s6 = ssub.s32 1, %s4
  %s7 = scalar_select 0, %s6, %s4
  // Predicated region
  $region2: #{base_encoder_forward.6} parent=0 // pred_check
    _
  $region3: #{base_encoder_forward.6} parent=0 // pred_check_branch
    %9 = sbr.rel (0) target = $region5
  $region4: #{base_encoder_forward.6} parent=0 // pred_region
    _
  $region5: #{base_encoder_forward.6} parent=0 // pred_fallthru
    _
  // Predicated region
  $region6: #{base_encoder_forward.6} parent=0 // pred_check
    _
  $region7: #{base_encoder_forward.6} parent=0 // pred_check_branch
    %11 = sbr.rel (0) target = $region9
  $region8: #{base_encoder_forward.6} parent=0 // pred_region
    _
  $region9: #{base_encoder_forward.6} parent=0 // pred_fallthru
    _
  // Predicated region
  $region10: #{base_encoder_forward.6} parent=0 // pred_check
    _
  $region11: #{base_encoder_forward.6} parent=0 // pred_check_branch
    %13 = sbr.rel (0) target = $region13
  $region12: #{base_encoder_forward.6} parent=0 // pred_region
    _
  $region13: #{base_encoder_forward.6} parent=0 // pred_fallthru
    _
  %v15 = vld [vmem:[%s0] sm:$0xf]
  %v16 = vld [vmem:[%s0 + $0x4] sm:$0xf]
  %v17 = vld [vmem:[%s0 + $0x8] sm:$0xf]
  %v18 = vld [vmem:[%s0 + $0xc] sm:$0xf]
  %v19 = vld [vmem:[%s0 + $0x10] sm:$0xf]
  %v20 = vld [vmem:[%s0 + $0x14] sm:$0xf]
  %v21 = vld [vmem:[%s0 + $0x18] sm:$0xf]
  %v22 = vld [vmem:[%s0 + $0x1c] sm:$0xf]
  %v23 = vld [vmem:[%s0 + $0x20] sm:$0xf]
  %v24 = vld [vmem:[%s0 + $0x24] sm:$0xf]
  %v25 = vld [vmem:[%s0 + $0x28] sm:$0xf]
  %v26 = vld [vmem:[%s0 + $0x2c] sm:$0xf]
  %v27 = vld [vmem:[%s0 + $0x30] sm:$0xf]
  %v28 = vld [vmem:[%s0 + $0x34] sm:$0xf]
  %v29 = vld [vmem:[%s0 + $0x38] sm:$0xf]
  %v30 = vld [vmem:[%s0 + $0x3c] sm:$0xf]
  %v31 = vld [vmem:[%s0 + $0x40] sm:$0xf]
  %v32 = vld [vmem:[%s0 + $0x44] sm:$0xf]
  %v33 = vld [vmem:[%s0 + $0x48] sm:$0xf]
  %v34 = vld [vmem:[%s0 + $0x4c] sm:$0xf]
  %v35 = vld [vmem:[%s0 + $0x50] sm:$0xf]
  %v36 = vld [vmem:[%s0 + $0x54] sm:$0xf]
  %v37 = vld [vmem:[%s0 + $0x58] sm:$0xf]
  %v38 = vld [vmem:[%s0 + $0x5c] sm:$0xf]
  %v39 = vld [vmem:[%s0 + $0x60] sm:$0xf]
  %v40 = vld [vmem:[%s0 + $0x64] sm:$0xf]
  %v41 = vld [vmem:[%s0 + $0x68] sm:$0xf]
  %v42 = vld [vmem:[%s0 + $0x6c] sm:$0xf]
  %v43 = vld [vmem:[%s0 + $0x70] sm:$0xf]
  %v44 = vld [vmem:[%s0 + $0x74] sm:$0xf]
  %v45 = vld [vmem:[%s0 + $0x78] sm:$0xf]
  %v46 = vld [vmem:[%s0 + $0x7c] sm:$0xf]
  %v47 = vld [vmem:[%s0 + $0x80] sm:$0xf]
  %v48 = vld [vmem:[%s0 + $0x84] sm:$0xf]
  %v49 = vld [vmem:[%s0 + $0x88] sm:$0xf]
  %v50 = vld [vmem:[%s0 + $0x8c] sm:$0xf]
  %v51 = vld [vmem:[%s0 + $0x90] sm:$0xf]
  %v52 = vld [vmem:[%s0 + $0x94] sm:$0xf]
  %v53 = vld [vmem:[%s0 + $0x98] sm:$0xf]
  %v54 = vld [vmem:[%s1] sm:$0xf]
  %v55 = vld [vmem:[%s1 + $0x4] sm:$0x1]
  %v56 = vld [vmem:[%s2] sm:$0x1]
  %v58 = vperm.slane %v56, 0
  %v99 = vunpack.c.l.b16 %v15
  %v100 = vunpack.c.l.b16 %v16
  %v101 = vunpack.c.l.b16 %v17
  %v102 = vunpack.c.l.b16 %v18
  %v103 = vunpack.c.l.b16 %v19
  %v104 = vunpack.c.l.b16 %v20
  %v105 = vunpack.c.l.b16 %v21
  %v106 = vunpack.c.l.b16 %v22
  %v107 = vunpack.c.l.b16 %v23
  %v108 = vunpack.c.l.b16 %v24
  %v109 = vunpack.c.l.b16 %v25
  %v110 = vunpack.c.l.b16 %v26
  %v111 = vunpack.c.l.b16 %v27
  %v112 = vunpack.c.l.b16 %v28
  %v113 = vunpack.c.l.b16 %v29
  %v114 = vunpack.c.l.b16 %v30
  %v115 = vunpack.c.l.b16 %v31
  %v116 = vunpack.c.l.b16 %v32
  %v117 = vunpack.c.l.b16 %v33
  %v118 = vunpack.c.l.b16 %v34
  %v119 = vunpack.c.l.b16 %v35
  %v120 = vunpack.c.l.b16 %v36
  %v121 = vunpack.c.l.b16 %v37
  %v122 = vunpack.c.l.b16 %v38
  %v123 = vunpack.c.l.b16 %v39
  %v124 = vunpack.c.l.b16 %v40
  %v125 = vunpack.c.l.b16 %v41
  %v126 = vunpack.c.l.b16 %v42
  %v127 = vunpack.c.l.b16 %v43
  %v128 = vunpack.c.l.b16 %v44
  %v129 = vunpack.c.l.b16 %v45
  %v130 = vunpack.c.l.b16 %v46
  %v131 = vunpack.c.l.b16 %v47
  %v132 = vunpack.c.l.b16 %v48
  %v133 = vunpack.c.l.b16 %v49
  %v134 = vunpack.c.l.b16 %v50
  %v135 = vunpack.c.l.b16 %v51
  %v136 = vunpack.c.l.b16 %v52
  %v137 = vunpack.c.l.b16 %v53
  %v138 = vpack.c.b16 %v100, %v99
  %v139 = vpack.c.b16 %v102, %v101
  %v140 = vpack.c.b16 %v104, %v103
  %v141 = vpack.c.b16 %v106, %v105
  %v142 = vpack.c.b16 %v108, %v107
  %v143 = vpack.c.b16 %v110, %v109
  %v144 = vpack.c.b16 %v112, %v111
  %v145 = vpack.c.b16 %v114, %v113
  %v146 = vpack.c.b16 %v116, %v115
  %v147 = vpack.c.b16 %v118, %v117
  %v148 = vpack.c.b16 %v120, %v119
  %v149 = vpack.c.b16 %v122, %v121
  %v150 = vpack.c.b16 %v124, %v123
  %v151 = vpack.c.b16 %v126, %v125
  %v152 = vpack.c.b16 %v128, %v127
  %v153 = vpack.c.b16 %v130, %v129
  %v154 = vpack.c.b16 %v132, %v131
  %v155 = vpack.c.b16 %v134, %v133
  %v156 = vpack.c.b16 %v136, %v135
  %v157 = vpack.c.b16 %v137, %v137
  %v160 = vunpack.c.l.b16 %v54
  %v161 = vunpack.c.l.b16 %v55
  %v162 = vpack.c.b16 %v161, %v160
  %vm163 = vcmask 72704
  %v165 = vsel %vm163, %v138, 0
  %v168 = vsel %vm163, %v139, 0
  %v171 = vsel %vm163, %v140, 0
  %v174 = vsel %vm163, %v141, 0
  %v177 = vsel %vm163, %v142, 0
  %v180 = vsel %vm163, %v143, 0
  %v183 = vsel %vm163, %v144, 0
  %v186 = vsel %vm163, %v145, 0
  %v189 = vsel %vm163, %v146, 0
  %v192 = vsel %vm163, %v147, 0
  %v195 = vsel %vm163, %v148, 0
  %v198 = vsel %vm163, %v149, 0
  %v201 = vsel %vm163, %v150, 0
  %v204 = vsel %vm163, %v151, 0
  %v207 = vsel %vm163, %v152, 0
  %v210 = vsel %vm163, %v153, 0
  %v213 = vsel %vm163, %v154, 0
  %v216 = vsel %vm163, %v155, 0
  %v219 = vsel %vm163, %v156, 0
  %v222 = vsel %vm163, %v157, 0
  %vm224 = vcmask 1043456
  %vm225 = vcmask 1044480
  %v226 = vsel %vm224, 4294967295, 65535
  %v227 = vsel %vm225, %v226, 0
  %v229 = vand.u32 %v162, %v227
  %231 = vmatpush.bf16.msra.mxu0 0
  %232 = vmatpush.bf16.msra.mxu0 0
  %233 = vmatpush.bf16.msra.mxu0 0
  %234 = vmatpush.bf16.msra.mxu0 0
  %235 = vmatpush.bf16.msra.mxu0 0
  %236 = vmatpush.bf16.msra.mxu0 0
  %237 = vmatpush.bf16.msra.mxu0 0
  %238 = vmatpush.bf16.msra.mxu0 %v229
  %239 = vmatmul.bf16.gmra.mxu0 %v165
  %v240 = vpop.f32.mrf.mxu0
  %v241 = vadd.f32 %v58, %v240
  %v242 = vpop.f32.mrf.mxu0
  %v243 = vadd.f32 %v58, %v242
  %244 = vmatmul.bf16.gmra.mxu0 %v168
  %v245 = vpop.f32.mrf.mxu0
  %v246 = vadd.f32 %v58, %v245
  %v247 = vpop.f32.mrf.mxu0
  %v248 = vadd.f32 %v58, %v247
  %249 = vmatmul.bf16.gmra.mxu0 %v171
  %v250 = vpop.f32.mrf.mxu0
  %v251 = vadd.f32 %v58, %v250
  %v252 = vpop.f32.mrf.mxu0
  %v253 = vadd.f32 %v58, %v252
  %254 = vmatmul.bf16.gmra.mxu0 %v174
  %v255 = vpop.f32.mrf.mxu0
  %v256 = vadd.f32 %v58, %v255
  %v257 = vpop.f32.mrf.mxu0
  %v258 = vadd.f32 %v58, %v257
  %259 = vmatmul.bf16.gmra.mxu0 %v177
  %v260 = vpop.f32.mrf.mxu0
  %v261 = vadd.f32 %v58, %v260
  %v262 = vpop.f32.mrf.mxu0
  %v263 = vadd.f32 %v58, %v262
  %264 = vmatmul.bf16.gmra.mxu0 %v180
  %v265 = vpop.f32.mrf.mxu0
  %v266 = vadd.f32 %v58, %v265
  %v267 = vpop.f32.mrf.mxu0
  %v268 = vadd.f32 %v58, %v267
  %269 = vmatmul.bf16.gmra.mxu0 %v183
  %v270 = vpop.f32.mrf.mxu0
  %v271 = vadd.f32 %v58, %v270
  %v272 = vpop.f32.mrf.mxu0
  %v273 = vadd.f32 %v58, %v272
  %274 = vmatmul.bf16.gmra.mxu0 %v186
  %v275 = vpop.f32.mrf.mxu0
  %v276 = vadd.f32 %v58, %v275
  %v277 = vpop.f32.mrf.mxu0
  %v278 = vadd.f32 %v58, %v277
  %279 = vmatmul.bf16.gmra.mxu0 %v189
  %v280 = vpop.f32.mrf.mxu0
  %v281 = vadd.f32 %v58, %v280
  %v282 = vpop.f32.mrf.mxu0
  %v283 = vadd.f32 %v58, %v282
  %284 = vmatmul.bf16.gmra.mxu0 %v192
  %v285 = vpop.f32.mrf.mxu0
  %v286 = vadd.f32 %v58, %v285
  %v287 = vpop.f32.mrf.mxu0
  %v288 = vadd.f32 %v58, %v287
  %289 = vmatmul.bf16.gmra.mxu0 %v195
  %v290 = vpop.f32.mrf.mxu0
  %v291 = vadd.f32 %v58, %v290
  %v292 = vpop.f32.mrf.mxu0
  %v293 = vadd.f32 %v58, %v292
  %294 = vmatmul.bf16.gmra.mxu0 %v198
  %v295 = vpop.f32.mrf.mxu0
  %v296 = vadd.f32 %v58, %v295
  %v297 = vpop.f32.mrf.mxu0
  %v298 = vadd.f32 %v58, %v297
  %299 = vmatmul.bf16.gmra.mxu0 %v201
  %v300 = vpop.f32.mrf.mxu0
  %v301 = vadd.f32 %v58, %v300
  %v302 = vpop.f32.mrf.mxu0
  %v303 = vadd.f32 %v58, %v302
  %304 = vmatmul.bf16.gmra.mxu0 %v204
  %v305 = vpop.f32.mrf.mxu0
  %v306 = vadd.f32 %v58, %v305
  %v307 = vpop.f32.mrf.mxu0
  %v308 = vadd.f32 %v58, %v307
  %309 = vmatmul.bf16.gmra.mxu0 %v207
  %v310 = vpop.f32.mrf.mxu0
  %v311 = vadd.f32 %v58, %v310
  %v312 = vpop.f32.mrf.mxu0
  %v313 = vadd.f32 %v58, %v312
  %314 = vmatmul.bf16.gmra.mxu0 %v210
  %v315 = vpop.f32.mrf.mxu0
  %v316 = vadd.f32 %v58, %v315
  %v317 = vpop.f32.mrf.mxu0
  %v318 = vadd.f32 %v58, %v317
  %319 = vmatmul.bf16.gmra.mxu0 %v213
  %v320 = vpop.f32.mrf.mxu0
  %v321 = vadd.f32 %v58, %v320
  %v322 = vpop.f32.mrf.mxu0
  %v323 = vadd.f32 %v58, %v322
  %324 = vmatmul.bf16.gmra.mxu0 %v216
  %v325 = vpop.f32.mrf.mxu0
  %v326 = vadd.f32 %v58, %v325
  %v327 = vpop.f32.mrf.mxu0
  %v328 = vadd.f32 %v58, %v327
  %329 = vmatmul.bf16.gmra.mxu0 %v219
  %v330 = vpop.f32.mrf.mxu0
  %v331 = vadd.f32 %v58, %v330
  %v332 = vpop.f32.mrf.mxu0
  %v333 = vadd.f32 %v58, %v332
  %334 = vmatmul.bf16.gmra.mxu0 %v222
  %v335 = vpop.f32.mrf.mxu0
  %v336 = vadd.f32 %v58, %v335
  %v337 = vpop.f32.mrf.mxu0
  %338 = vdwg.mxu0
  %v339 = vmax.f32 %v241, 0.0
  %v340 = vmax.f32 %v243, 0.0
  %v341 = vmax.f32 %v246, 0.0
  %v342 = vmax.f32 %v248, 0.0
  %v343 = vmax.f32 %v251, 0.0
  %v344 = vmax.f32 %v253, 0.0
  %v345 = vmax.f32 %v256, 0.0
  %v346 = vmax.f32 %v258, 0.0
  %v347 = vmax.f32 %v261, 0.0
  %v348 = vmax.f32 %v263, 0.0
  %v349 = vmax.f32 %v266, 0.0
  %v350 = vmax.f32 %v268, 0.0
  %v351 = vmax.f32 %v271, 0.0
  %v352 = vmax.f32 %v273, 0.0
  %v353 = vmax.f32 %v276, 0.0
  %v354 = vmax.f32 %v278, 0.0
  %v355 = vmax.f32 %v281, 0.0
  %v356 = vmax.f32 %v283, 0.0
  %v357 = vmax.f32 %v286, 0.0
  %v358 = vmax.f32 %v288, 0.0
  %v359 = vmax.f32 %v291, 0.0
  %v360 = vmax.f32 %v293, 0.0
  %v361 = vmax.f32 %v296, 0.0
  %v362 = vmax.f32 %v298, 0.0
  %v363 = vmax.f32 %v301, 0.0
  %v364 = vmax.f32 %v303, 0.0
  %v365 = vmax.f32 %v306, 0.0
  %v366 = vmax.f32 %v308, 0.0
  %v367 = vmax.f32 %v311, 0.0
  %v368 = vmax.f32 %v313, 0.0
  %v369 = vmax.f32 %v316, 0.0
  %v370 = vmax.f32 %v318, 0.0
  %v371 = vmax.f32 %v321, 0.0
  %v372 = vmax.f32 %v323, 0.0
  %v373 = vmax.f32 %v326, 0.0
  %v374 = vmax.f32 %v328, 0.0
  %v375 = vmax.f32 %v331, 0.0
  %v376 = vmax.f32 %v333, 0.0
  %v377 = vmax.f32 %v336, 0.0
  %v378 = vpack.c.bf16 %v339, %v339
  %v379 = vpack.c.bf16 %v340, %v340
  %v380 = vpack.c.bf16 %v341, %v341
  %v381 = vpack.c.bf16 %v342, %v342
  %v382 = vpack.c.bf16 %v343, %v343
  %v383 = vpack.c.bf16 %v344, %v344
  %v384 = vpack.c.bf16 %v345, %v345
  %v385 = vpack.c.bf16 %v346, %v346
  %v386 = vpack.c.bf16 %v347, %v347
  %v387 = vpack.c.bf16 %v348, %v348
  %v388 = vpack.c.bf16 %v349, %v349
  %v389 = vpack.c.bf16 %v350, %v350
  %v390 = vpack.c.bf16 %v351, %v351
  %v391 = vpack.c.bf16 %v352, %v352
  %v392 = vpack.c.bf16 %v353, %v353
  %v393 = vpack.c.bf16 %v354, %v354
  %v394 = vpack.c.bf16 %v355, %v355
  %v395 = vpack.c.bf16 %v356, %v356
  %v396 = vpack.c.bf16 %v357, %v357
  %v397 = vpack.c.bf16 %v358, %v358
  %v398 = vpack.c.bf16 %v359, %v359
  %v399 = vpack.c.bf16 %v360, %v360
  %v400 = vpack.c.bf16 %v361, %v361
  %v401 = vpack.c.bf16 %v362, %v362
  %v402 = vpack.c.bf16 %v363, %v363
  %v403 = vpack.c.bf16 %v364, %v364
  %v404 = vpack.c.bf16 %v365, %v365
  %v405 = vpack.c.bf16 %v366, %v366
  %v406 = vpack.c.bf16 %v367, %v367
  %v407 = vpack.c.bf16 %v368, %v368
  %v408 = vpack.c.bf16 %v369, %v369
  %v409 = vpack.c.bf16 %v370, %v370
  %v410 = vpack.c.bf16 %v371, %v371
  %v411 = vpack.c.bf16 %v372, %v372
  %v412 = vpack.c.bf16 %v373, %v373
  %v413 = vpack.c.bf16 %v374, %v374
  %v414 = vpack.c.bf16 %v375, %v375
  %v415 = vpack.c.bf16 %v376, %v376
  %v416 = vpack.c.bf16 %v377, %v377
  %vm417 = vcmask 257024
  %418 = vst.msk [vmem:[%s3] sm:$0xf] %vm417, %v378
  %419 = vst.msk [vmem:[%s3 + $0x4] sm:$0xf] %vm417, %v379
  %420 = vst.msk [vmem:[%s3 + $0x8] sm:$0xf] %vm417, %v380
  %421 = vst.msk [vmem:[%s3 + $0xc] sm:$0xf] %vm417, %v381
  %422 = vst.msk [vmem:[%s3 + $0x10] sm:$0xf] %vm417, %v382
  %423 = vst.msk [vmem:[%s3 + $0x14] sm:$0xf] %vm417, %v383
  %424 = vst.msk [vmem:[%s3 + $0x18] sm:$0xf] %vm417, %v384
  %425 = vst.msk [vmem:[%s3 + $0x1c] sm:$0xf] %vm417, %v385
  %426 = vst.msk [vmem:[%s3 + $0x20] sm:$0xf] %vm417, %v386
  %427 = vst.msk [vmem:[%s3 + $0x24] sm:$0xf] %vm417, %v387
  %428 = vst.msk [vmem:[%s3 + $0x28] sm:$0xf] %vm417, %v388
  %429 = vst.msk [vmem:[%s3 + $0x2c] sm:$0xf] %vm417, %v389
  %430 = vst.msk [vmem:[%s3 + $0x30] sm:$0xf] %vm417, %v390
  %431 = vst.msk [vmem:[%s3 + $0x34] sm:$0xf] %vm417, %v391
  %432 = vst.msk [vmem:[%s3 + $0x38] sm:$0xf] %vm417, %v392
  %433 = vst.msk [vmem:[%s3 + $0x3c] sm:$0xf] %vm417, %v393
  %434 = vst.msk [vmem:[%s3 + $0x40] sm:$0xf] %vm417, %v394
  %435 = vst.msk [vmem:[%s3 + $0x44] sm:$0xf] %vm417, %v395
  %436 = vst.msk [vmem:[%s3 + $0x48] sm:$0xf] %vm417, %v396
  %437 = vst.msk [vmem:[%s3 + $0x4c] sm:$0xf] %vm417, %v397
  %438 = vst.msk [vmem:[%s3 + $0x50] sm:$0xf] %vm417, %v398
  %439 = vst.msk [vmem:[%s3 + $0x54] sm:$0xf] %vm417, %v399
  %440 = vst.msk [vmem:[%s3 + $0x58] sm:$0xf] %vm417, %v400
  %441 = vst.msk [vmem:[%s3 + $0x5c] sm:$0xf] %vm417, %v401
  %442 = vst.msk [vmem:[%s3 + $0x60] sm:$0xf] %vm417, %v402
  %443 = vst.msk [vmem:[%s3 + $0x64] sm:$0xf] %vm417, %v403
  %444 = vst.msk [vmem:[%s3 + $0x68] sm:$0xf] %vm417, %v404
  %445 = vst.msk [vmem:[%s3 + $0x6c] sm:$0xf] %vm417, %v405
  %446 = vst.msk [vmem:[%s3 + $0x70] sm:$0xf] %vm417, %v406
  %447 = vst.msk [vmem:[%s3 + $0x74] sm:$0xf] %vm417, %v407
  %448 = vst.msk [vmem:[%s3 + $0x78] sm:$0xf] %vm417, %v408
  %449 = vst.msk [vmem:[%s3 + $0x7c] sm:$0xf] %vm417, %v409
  %450 = vst.msk [vmem:[%s3 + $0x80] sm:$0xf] %vm417, %v410
  %451 = vst.msk [vmem:[%s3 + $0x84] sm:$0xf] %vm417, %v411
  %452 = vst.msk [vmem:[%s3 + $0x88] sm:$0xf] %vm417, %v412
  %453 = vst.msk [vmem:[%s3 + $0x8c] sm:$0xf] %vm417, %v413
  %454 = vst.msk [vmem:[%s3 + $0x90] sm:$0xf] %vm417, %v414
  %455 = vst.msk [vmem:[%s3 + $0x94] sm:$0xf] %vm417, %v415
  %456 = vst.msk [vmem:[%s3 + $0x98] sm:$0xf] %vm417, %v416
  // Predicated region
  $region14: #{base_encoder_forward.6} parent=0 // pred_check
    _
  $region15: #{base_encoder_forward.6} parent=0 // pred_check_branch
    %458 = sbr.rel (0) target = $region17
  $region16: #{base_encoder_forward.6} parent=0 // pred_region
    _
  $region17: #{base_encoder_forward.6} parent=0 // pred_fallthru
    _
  // Predicated region
  $region18: #{base_encoder_forward.6} parent=0 // pred_check
    _
  $region19: #{base_encoder_forward.6} parent=0 // pred_check_branch
    %460 = sbr.rel (0) target = $region21
  $region20: #{base_encoder_forward.6} parent=0 // pred_region
    _
  $region21: #{base_encoder_forward.6} parent=0 // pred_fallthru
    _

// kernel: base_encoder_forward.7
$region0: #{base_encoder_forward.7}
  #allocation0 [shape = 'u32[]', space=smem, size = 0x4, offset = 0x4, fixed_abs, tag = 'smem constant byte address 0x4 - core index']
  #allocation1 [shape = 'u32[72,128]{1,0:T(1,128)}', space=vmem, size = 0x9000, scoped, tag = 'internal scratch']
  %s0 = inlined_call_operand.vmem [shape: bf16[64,288], index: 0, kind: input, shape index: {}]
  %s1 = inlined_call_operand.vmem [shape: bf16[288,32], index: 1, kind: input, shape index: {}]
  %s2 = inlined_call_operand.vmem [shape: f32[1,32], index: 2, kind: input, shape index: {}]
  %s3 = inlined_call_operand.vmem [shape: bf16[64,32], index: 3, kind: output, shape index: {}]
  %s4 = sld [smem:[#allocation0]]
  $region22: #{base_encoder_forward.7} parent=0
    _
  %s6 = ssub.s32 1, %s4
  %s7 = scalar_select 0, %s6, %s4
  // Predicated region
  $region2: #{base_encoder_forward.7} parent=0 // pred_check
    _
  $region3: #{base_encoder_forward.7} parent=0 // pred_check_branch
    %9 = sbr.rel (0) target = $region5
  $region4: #{base_encoder_forward.7} parent=0 // pred_region
    _
  $region5: #{base_encoder_forward.7} parent=0 // pred_fallthru
    _
  // Predicated region
  $region6: #{base_encoder_forward.7} parent=0 // pred_check
    _
  $region7: #{base_encoder_forward.7} parent=0 // pred_check_branch
    %11 = sbr.rel (0) target = $region9
  $region8: #{base_encoder_forward.7} parent=0 // pred_region
    _
  $region9: #{base_encoder_forward.7} parent=0 // pred_fallthru
    _
  // Predicated region
  $region10: #{base_encoder_forward.7} parent=0 // pred_check
    _
  $region11: #{base_encoder_forward.7} parent=0 // pred_check_branch
    %13 = sbr.rel (0) target = $region13
  $region12: #{base_encoder_forward.7} parent=0 // pred_region
    _
  $region13: #{base_encoder_forward.7} parent=0 // pred_fallthru
    _
  %v15 = vld [vmem:[%s0] sm:$0xff]
  %v16 = vld [vmem:[%s0 + $0x8] sm:$0xf]
  %v17 = vld [vmem:[%s0 + $0xc] sm:$0xff]
  %v18 = vld [vmem:[%s0 + $0x14] sm:$0xf]
  %v19 = vld [vmem:[%s0 + $0x18] sm:$0xff]
  %v20 = vld [vmem:[%s0 + $0x20] sm:$0xf]
  %v21 = vld [vmem:[%s0 + $0x24] sm:$0xff]
  %v22 = vld [vmem:[%s0 + $0x2c] sm:$0xf]
  %v23 = vld [vmem:[%s0 + $0x30] sm:$0xff]
  %v24 = vld [vmem:[%s0 + $0x38] sm:$0xf]
  %v25 = vld [vmem:[%s0 + $0x3c] sm:$0xff]
  %v26 = vld [vmem:[%s0 + $0x44] sm:$0xf]
  %v27 = vld [vmem:[%s0 + $0x48] sm:$0xff]
  %v28 = vld [vmem:[%s0 + $0x50] sm:$0xf]
  %v29 = vld [vmem:[%s0 + $0x54] sm:$0xff]
  %v30 = vld [vmem:[%s0 + $0x5c] sm:$0xf]
  %v31 = vld [vmem:[%s1] sm:$0xf]
  %v32 = vld [vmem:[%s1 + $0x4] sm:$0xf]
  %v33 = vld [vmem:[%s1 + $0x8] sm:$0xf]
  %v34 = vld [vmem:[%s1 + $0xc] sm:$0xf]
  %v35 = vld [vmem:[%s1 + $0x10] sm:$0xf]
  %v36 = vld [vmem:[%s1 + $0x14] sm:$0xf]
  %v37 = vld [vmem:[%s1 + $0x18] sm:$0xf]
  %v38 = vld [vmem:[%s1 + $0x1c] sm:$0xf]
  %v39 = vld [vmem:[%s1 + $0x20] sm:$0xf]
  %v40 = vld [vmem:[%s1 + $0x24] sm:$0xf]
  %v41 = vld [vmem:[%s1 + $0x28] sm:$0xf]
  %v42 = vld [vmem:[%s1 + $0x2c] sm:$0xf]
  %v43 = vld [vmem:[%s1 + $0x30] sm:$0xf]
  %v44 = vld [vmem:[%s1 + $0x34] sm:$0xf]
  %v45 = vld [vmem:[%s1 + $0x38] sm:$0xf]
  %v46 = vld [vmem:[%s1 + $0x3c] sm:$0xf]
  %v47 = vld [vmem:[%s1 + $0x40] sm:$0xf]
  %v48 = vld [vmem:[%s1 + $0x44] sm:$0xf]
  %v49 = vld [vmem:[%s1 + $0x48] sm:$0xf]
  %v50 = vld [vmem:[%s1 + $0x4c] sm:$0xf]
  %v51 = vld [vmem:[%s1 + $0x50] sm:$0xf]
  %v52 = vld [vmem:[%s1 + $0x54] sm:$0xf]
  %v53 = vld [vmem:[%s1 + $0x58] sm:$0xf]
  %v54 = vld [vmem:[%s1 + $0x5c] sm:$0xf]
  %v55 = vld [vmem:[%s1 + $0x60] sm:$0xf]
  %v56 = vld [vmem:[%s1 + $0x64] sm:$0xf]
  %v57 = vld [vmem:[%s1 + $0x68] sm:$0xf]
  %v58 = vld [vmem:[%s1 + $0x6c] sm:$0xf]
  %v59 = vld [vmem:[%s1 + $0x70] sm:$0xf]
  %v60 = vld [vmem:[%s1 + $0x74] sm:$0xf]
  %v61 = vld [vmem:[%s1 + $0x78] sm:$0xf]
  %v62 = vld [vmem:[%s1 + $0x7c] sm:$0xf]
  %v63 = vld [vmem:[%s1 + $0x80] sm:$0xf]
  %v64 = vld [vmem:[%s1 + $0x84] sm:$0xf]
  %v65 = vld [vmem:[%s1 + $0x88] sm:$0xf]
  %v66 = vld [vmem:[%s1 + $0x8c] sm:$0xf]
  %v67 = vld [vmem:[%s2] sm:$0x1]
  %v69 = vperm.slane %v67, 0
  %v87 = vunpack.c.l.b16 %v15
  %v88 = vunpack.c.h.b16 %v15
  %v89 = vunpack.c.l.b16 %v16
  %v90 = vunpack.c.l.b16 %v17
  %v91 = vunpack.c.h.b16 %v17
  %v92 = vunpack.c.l.b16 %v18
  %v93 = vunpack.c.l.b16 %v19
  %v94 = vunpack.c.h.b16 %v19
  %v95 = vunpack.c.l.b16 %v20
  %v96 = vunpack.c.l.b16 %v21
  %v97 = vunpack.c.h.b16 %v21
  %v98 = vunpack.c.l.b16 %v22
  %v99 = vunpack.c.l.b16 %v23
  %v100 = vunpack.c.h.b16 %v23
  %v101 = vunpack.c.l.b16 %v24
  %v102 = vunpack.c.l.b16 %v25
  %v103 = vunpack.c.h.b16 %v25
  %v104 = vunpack.c.l.b16 %v26
  %v105 = vunpack.c.l.b16 %v27
  %v106 = vunpack.c.h.b16 %v27
  %v107 = vunpack.c.l.b16 %v28
  %v108 = vunpack.c.l.b16 %v29
  %v109 = vunpack.c.h.b16 %v29
  %v110 = vunpack.c.l.b16 %v30
  %v111 = vpack.c.b16 %v90, %v87
  %v112 = vpack.c.b16 %v91, %v88
  %v113 = vpack.c.b16 %v92, %v89
  %v114 = vpack.c.b16 %v96, %v93
  %v115 = vpack.c.b16 %v97, %v94
  %v116 = vpack.c.b16 %v98, %v95
  %v117 = vpack.c.b16 %v102, %v99
  %v118 = vpack.c.b16 %v103, %v100
  %v119 = vpack.c.b16 %v104, %v101
  %v120 = vpack.c.b16 %v108, %v105
  %v121 = vpack.c.b16 %v109, %v106
  %v122 = vpack.c.b16 %v110, %v107
  %v167 = vunpack.c.l.b16 %v31
  %v168 = vunpack.c.l.b16 %v32
  %v169 = vunpack.c.l.b16 %v33
  %v170 = vunpack.c.l.b16 %v34
  %v171 = vunpack.c.l.b16 %v35
  %v172 = vunpack.c.l.b16 %v36
  %v173 = vunpack.c.l.b16 %v37
  %v174 = vunpack.c.l.b16 %v38
  %v175 = vunpack.c.l.b16 %v39
  %v176 = vunpack.c.l.b16 %v40
  %v177 = vunpack.c.l.b16 %v41
  %v178 = vunpack.c.l.b16 %v42
  %v179 = vunpack.c.l.b16 %v43
  %v180 = vunpack.c.l.b16 %v44
  %v181 = vunpack.c.l.b16 %v45
  %v182 = vunpack.c.l.b16 %v46
  %v183 = vunpack.c.l.b16 %v47
  %v184 = vunpack.c.l.b16 %v48
  %v185 = vunpack.c.l.b16 %v49
  %v186 = vunpack.c.l.b16 %v50
  %v187 = vunpack.c.l.b16 %v51
  %v188 = vunpack.c.l.b16 %v52
  %v189 = vunpack.c.l.b16 %v53
  %v190 = vunpack.c.l.b16 %v54
  %v191 = vunpack.c.l.b16 %v55
  %v192 = vunpack.c.l.b16 %v56
  %v193 = vunpack.c.l.b16 %v57
  %v194 = vunpack.c.l.b16 %v58
  %v195 = vunpack.c.l.b16 %v59
  %v196 = vunpack.c.l.b16 %v60
  %v197 = vunpack.c.l.b16 %v61
  %v198 = vunpack.c.l.b16 %v62
  %v199 = vunpack.c.l.b16 %v63
  %v200 = vunpack.c.l.b16 %v64
  %v201 = vunpack.c.l.b16 %v65
  %v202 = vunpack.c.l.b16 %v66
  %v203 = vpack.c.b16 %v168, %v167
  %v204 = vpack.c.b16 %v170, %v169
  %v205 = vpack.c.b16 %v172, %v171
  %v206 = vpack.c.b16 %v174, %v173
  %v207 = vpack.c.b16 %v176, %v175
  %v208 = vpack.c.b16 %v178, %v177
  %v209 = vpack.c.b16 %v180, %v179
  %v210 = vpack.c.b16 %v182, %v181
  %v211 = vpack.c.b16 %v184, %v183
  %v212 = vpack.c.b16 %v186, %v185
  %v213 = vpack.c.b16 %v188, %v187
  %v214 = vpack.c.b16 %v190, %v189
  %v215 = vpack.c.b16 %v192, %v191
  %v216 = vpack.c.b16 %v194, %v193
  %v217 = vpack.c.b16 %v196, %v195
  %v218 = vpack.c.b16 %v198, %v197
  %v219 = vpack.c.b16 %v200, %v199
  %v220 = vpack.c.b16 %v202, %v201
  %vm239 = vcmask 261120
  %v241 = vsel %vm239, %v113, 0
  %v244 = vsel %vm239, %v116, 0
  %v247 = vsel %vm239, %v119, 0
  %v250 = vsel %vm239, %v122, 0
  %252 = vmatpush.bf16.msra.mxu0 %v210
  %253 = vmatpush.bf16.msra.mxu0 %v209
  %254 = vmatpush.bf16.msra.mxu0 %v208
  %255 = vmatpush.bf16.msra.mxu0 %v207
  %256 = vmatpush.bf16.msra.mxu0 %v206
  %257 = vmatpush.bf16.msra.mxu0 %v205
  %258 = vmatpush.bf16.msra.mxu0 %v204
  %259 = vmatpush.bf16.msra.mxu0 %v203
  %260 = vmatmul.bf16.gmra.mxu0 %v111
  %v261 = vpop.f32.mrf.mxu0
  %v262 = vadd.f32 %v69, %v261
  %v263 = vpop.f32.mrf.mxu0
  %v264 = vadd.f32 %v69, %v263
  %265 = vmatmul.bf16.gmra.mxu0 %v114
  %v266 = vpop.f32.mrf.mxu0
  %v267 = vadd.f32 %v69, %v266
  %v268 = vpop.f32.mrf.mxu0
  %v269 = vadd.f32 %v69, %v268
  %270 = vmatmul.bf16.gmra.mxu0 %v117
  %v271 = vpop.f32.mrf.mxu0
  %v272 = vadd.f32 %v69, %v271
  %v273 = vpop.f32.mrf.mxu0
  %v274 = vadd.f32 %v69, %v273
  %275 = vmatmul.bf16.gmra.mxu0 %v120
  %v276 = vpop.f32.mrf.mxu0
  %v277 = vadd.f32 %v69, %v276
  %v278 = vpop.f32.mrf.mxu0
  %v279 = vadd.f32 %v69, %v278
  %280 = vdwg.mxu0
  %281 = vmatpush.bf16.msra.mxu0 %v218
  %282 = vmatpush.bf16.msra.mxu0 %v217
  %283 = vmatpush.bf16.msra.mxu0 %v216
  %284 = vmatpush.bf16.msra.mxu0 %v215
  %285 = vmatpush.bf16.msra.mxu0 %v214
  %286 = vmatpush.bf16.msra.mxu0 %v213
  %287 = vmatpush.bf16.msra.mxu0 %v212
  %288 = vmatpush.bf16.msra.mxu0 %v211
  %289 = vmatmul.bf16.gmra.mxu0 %v112
  %v290 = vpop.f32.mrf.mxu0
  %v291 = vadd.f32 %v262, %v290
  %v292 = vpop.f32.mrf.mxu0
  %v293 = vadd.f32 %v264, %v292
  %294 = vmatmul.bf16.gmra.mxu0 %v115
  %v295 = vpop.f32.mrf.mxu0
  %v296 = vadd.f32 %v267, %v295
  %v297 = vpop.f32.mrf.mxu0
  %v298 = vadd.f32 %v269, %v297
  %299 = vmatmul.bf16.gmra.mxu0 %v118
  %v300 = vpop.f32.mrf.mxu0
  %v301 = vadd.f32 %v272, %v300
  %v302 = vpop.f32.mrf.mxu0
  %v303 = vadd.f32 %v274, %v302
  %304 = vmatmul.bf16.gmra.mxu0 %v121
  %v305 = vpop.f32.mrf.mxu0
  %v306 = vadd.f32 %v277, %v305
  %v307 = vpop.f32.mrf.mxu0
  %v308 = vadd.f32 %v279, %v307
  %309 = vdwg.mxu0
  %310 = vmatpush.bf16.msra.mxu0 0
  %311 = vmatpush.bf16.msra.mxu0 0
  %312 = vmatpush.bf16.msra.mxu0 0
  %313 = vmatpush.bf16.msra.mxu0 0
  %314 = vmatpush.bf16.msra.mxu0 0
  %315 = vmatpush.bf16.msra.mxu0 0
  %316 = vmatpush.bf16.msra.mxu0 %v220
  %317 = vmatpush.bf16.msra.mxu0 %v219
  %318 = vmatmul.bf16.gmra.mxu0 %v241
  %v319 = vpop.f32.mrf.mxu0
  %v320 = vadd.f32 %v291, %v319
  %v321 = vpop.f32.mrf.mxu0
  %v322 = vadd.f32 %v293, %v321
  %323 = vmatmul.bf16.gmra.mxu0 %v244
  %v324 = vpop.f32.mrf.mxu0
  %v325 = vadd.f32 %v296, %v324
  %v326 = vpop.f32.mrf.mxu0
  %v327 = vadd.f32 %v298, %v326
  %328 = vmatmul.bf16.gmra.mxu0 %v247
  %v329 = vpop.f32.mrf.mxu0
  %v330 = vadd.f32 %v301, %v329
  %v331 = vpop.f32.mrf.mxu0
  %v332 = vadd.f32 %v303, %v331
  %333 = vmatmul.bf16.gmra.mxu0 %v250
  %v334 = vpop.f32.mrf.mxu0
  %v335 = vadd.f32 %v306, %v334
  %v336 = vpop.f32.mrf.mxu0
  %v337 = vadd.f32 %v308, %v336
  %338 = vdwg.mxu0
  %v339 = vmax.f32 %v320, 0.0
  %v340 = vmax.f32 %v322, 0.0
  %v341 = vmax.f32 %v325, 0.0
  %v342 = vmax.f32 %v327, 0.0
  %v343 = vmax.f32 %v330, 0.0
  %v344 = vmax.f32 %v332, 0.0
  %v345 = vmax.f32 %v335, 0.0
  %v346 = vmax.f32 %v337, 0.0
  %v347 = vpack.c.bf16 %v339, %v339
  %v348 = vpack.c.bf16 %v340, %v340
  %v349 = vpack.c.bf16 %v341, %v341
  %v350 = vpack.c.bf16 %v342, %v342
  %v351 = vpack.c.bf16 %v343, %v343
  %v352 = vpack.c.bf16 %v344, %v344
  %v353 = vpack.c.bf16 %v345, %v345
  %v354 = vpack.c.bf16 %v346, %v346
  %vm355 = vcmask 257024
  %356 = vst.msk [vmem:[%s3] sm:$0xf] %vm355, %v347
  %357 = vst.msk [vmem:[%s3 + $0x4] sm:$0xf] %vm355, %v348
  %358 = vst.msk [vmem:[%s3 + $0x8] sm:$0xf] %vm355, %v349
  %359 = vst.msk [vmem:[%s3 + $0xc] sm:$0xf] %vm355, %v350
  %360 = vst.msk [vmem:[%s3 + $0x10] sm:$0xf] %vm355, %v351
  %361 = vst.msk [vmem:[%s3 + $0x14] sm:$0xf] %vm355, %v352
  %362 = vst.msk [vmem:[%s3 + $0x18] sm:$0xf] %vm355, %v353
  %363 = vst.msk [vmem:[%s3 + $0x1c] sm:$0xf] %vm355, %v354
  // Predicated region
  $region14: #{base_encoder_forward.7} parent=0 // pred_check
    _
  $region15: #{base_encoder_forward.7} parent=0 // pred_check_branch
    %365 = sbr.rel (0) target = $region17
  $region16: #{base_encoder_forward.7} parent=0 // pred_region
    _
  $region17: #{base_encoder_forward.7} parent=0 // pred_fallthru
    _
  // Predicated region
  $region18: #{base_encoder_forward.7} parent=0 // pred_check
    _
  $region19: #{base_encoder_forward.7} parent=0 // pred_check_branch
    %367 = sbr.rel (0) target = $region21
  $region20: #{base_encoder_forward.7} parent=0 // pred_region
    _
  $region21: #{base_encoder_forward.7} parent=0 // pred_fallthru
    _

// kernel: base_encoder_forward.8
$region0: #{base_encoder_forward.8}
  #allocation0 [shape = 'u32[]', space=smem, size = 0x4, offset = 0x4, fixed_abs, tag = 'smem constant byte address 0x4 - core index']
  #allocation1 [shape = 'u32[72,128]{1,0:T(1,128)}', space=vmem, size = 0x9000, scoped, tag = 'internal scratch']
  %s0 = inlined_call_operand.vmem [shape: bf16[2,8,128], index: 0, kind: input, shape index: {}]
  %s1 = inlined_call_operand.vmem [shape: bf16[128,32], index: 1, kind: input, shape index: {}]
  %s2 = inlined_call_operand.vmem [shape: f32[1,32], index: 2, kind: input, shape index: {}]
  %s3 = inlined_call_operand.vmem [shape: f32[8,32], index: 3, kind: input, shape index: {}]
  %s4 = inlined_call_operand.vmem [shape: f32[2,8,32], index: 4, kind: output, shape index: {}]
  %s5 = sld [smem:[#allocation0]]
  $region49: #{base_encoder_forward.8} parent=0
    _
  %s7 = ssub.s32 1, %s5
  %s8 = scalar_select 0, %s7, %s5
  loop: start=0, step=1, limit=4
  $region2: #{base_encoder_forward.8} parent=0 // loop_pre_header
    _
  $region3: #{base_encoder_forward.8} parent=0 // loop_header
    %s10 = sphi 0, %s14
    %p11 = scmp.ge.s32.totalorder %s10, 4
    %s20 = sphi 0, %s22
    %s23 = sphi 0, %s20
    %s24 = sphi 0, %s23
    %s40 = sphi 0, %s24
    %s44 = sphi 0, %s44
    %s46 = sphi 0, %s44
    %s47 = sphi 0, %s46
    %s61 = sphi 0, %s47
    %s65 = sphi 0, %s65
    %s67 = sphi 0, %s65
    %s68 = sphi 0, %s67
    %s82 = sphi 0, %s68
    %s86 = sphi 0, %s86
    %s88 = sphi 0, %s86
    %s89 = sphi 0, %s88
    %s103 = sphi 0, %s89
    %s109 = sphi 0, %s111
    %s112 = sphi 0, %s109
    %s113 = sphi 0, %s112
    %s129 = sphi 0, %s113
  $region4: #{base_encoder_forward.8} parent=0 // loop_header_branch
    %13 = sbr.rel (%p11) target = $region8
  $region5: #{base_encoder_forward.8} parent=0 // loop_body
    %s15 = ssub.s32 %s10, 1
    %s16 = ssub.s32 %s10, 2
    %s17 = sadd.s32 %s10, 1
    %s18 = ssub.s32 %s10, %s17
    %p19 = scmp.eq.s32.totalorder %s18, 0
    %s21 = sadd.s32 %s20, 1
    %s22 = scalar_select %p19, %s20, %s21
    %p25 = pneg %p19
    %p26 = scmp.eq.s32.totalorder %s10, 1
    %p27 = por %p25, %p26
    %p28 = scmp.ne.s32.totalorder %s20, %s23
    %p29 = scmp.eq.s32.totalorder %s10, 0
    %p30 = por %p28, %p29
    %p31 = scmp.ne.s32.totalorder %s20, %s23
    %p32 = scmp.eq.s32.totalorder %s15, 1
    %p33 = por %p31, %p32
    %p34 = scmp.ne.s32.totalorder %s23, %s24
    %p35 = scmp.eq.s32.totalorder %s15, 0
    %p36 = por %p34, %p35
    %p37 = scmp.ne.s32.totalorder %s23, %s24
    %p38 = scmp.eq.s32.totalorder %s16, 1
    %p39 = por %p37, %p38
    %p41 = scmp.ne.s32.totalorder %s24, %s40
    %p42 = scmp.eq.s32.totalorder %s16, 0
    %p43 = por %p41, %p42
    %s45 = sadd.s32 %s44, 1
    %p48 = scmp.eq.s32.totalorder %s10, 1
    %p49 = scmp.ne.s32.totalorder %s44, %s46
    %p50 = scmp.eq.s32.totalorder %s10, 0
    %p51 = por %p49, %p50
    %p52 = scmp.ne.s32.totalorder %s44, %s46
    %p53 = scmp.eq.s32.totalorder %s15, 1
    %p54 = por %p52, %p53
    %p55 = scmp.ne.s32.totalorder %s46, %s47
    %p56 = scmp.eq.s32.totalorder %s15, 0
    %p57 = por %p55, %p56
    %p58 = scmp.ne.s32.totalorder %s46, %s47
    %p59 = scmp.eq.s32.totalorder %s16, 1
    %p60 = por %p58, %p59
    %p62 = scmp.ne.s32.totalorder %s47, %s61
    %p63 = scmp.eq.s32.totalorder %s16, 0
    %p64 = por %p62, %p63
    %s66 = sadd.s32 %s65, 1
    %p69 = scmp.eq.s32.totalorder %s10, 1
    %p70 = scmp.ne.s32.totalorder %s65, %s67
    %p71 = scmp.eq.s32.totalorder %s10, 0
    %p72 = por %p70, %p71
    %p73 = scmp.ne.s32.totalorder %s65, %s67
    %p74 = scmp.eq.s32.totalorder %s15, 1
    %p75 = por %p73, %p74
    %p76 = scmp.ne.s32.totalorder %s67, %s68
    %p77 = scmp.eq.s32.totalorder %s15, 0
    %p78 = por %p76, %p77
    %p79 = scmp.ne.s32.totalorder %s67, %s68
    %p80 = scmp.eq.s32.totalorder %s16, 1
    %p81 = por %p79, %p80
    %p83 = scmp.ne.s32.totalorder %s68, %s82
    %p84 = scmp.eq.s32.totalorder %s16, 0
    %p85 = por %p83, %p84
    %s87 = sadd.s32 %s86, 1
    %p90 = scmp.eq.s32.totalorder %s10, 1
    %p91 = scmp.ne.s32.totalorder %s86, %s88
    %p92 = scmp.eq.s32.totalorder %s10, 0
    %p93 = por %p91, %p92
    %p94 = scmp.ne.s32.totalorder %s86, %s88
    %p95 = scmp.eq.s32.totalorder %s15, 1
    %p96 = por %p94, %p95
    %p97 = scmp.ne.s32.totalorder %s88, %s89
    %p98 = scmp.eq.s32.totalorder %s15, 0
    %p99 = por %p97, %p98
    %p100 = scmp.ne.s32.totalorder %s88, %s89
    %p101 = scmp.eq.s32.totalorder %s16, 1
    %p102 = por %p100, %p101
    %p104 = scmp.ne.s32.totalorder %s89, %s103
    %p105 = scmp.eq.s32.totalorder %s16, 0
    %p106 = por %p104, %p105
    %s107 = ssub.s32 %s10, %s17
    %p108 = scmp.eq.s32.totalorder %s107, 0
    %s110 = sadd.s32 %s109, 1
    %s111 = scalar_select %p108, %s109, %s110
    %p114 = pneg %p108
    %p115 = scmp.eq.s32.totalorder %s10, 1
    %p116 = por %p114, %p115
    %p117 = scmp.ne.s32.totalorder %s109, %s112
    %p118 = scmp.eq.s32.totalorder %s10, 0
    %p119 = por %p117, %p118
    %p120 = scmp.ne.s32.totalorder %s109, %s112
    %p121 = scmp.eq.s32.totalorder %s15, 1
    %p122 = por %p120, %p121
    %p123 = scmp.ne.s32.totalorder %s112, %s113
    %p124 = scmp.eq.s32.totalorder %s15, 0
    %p125 = por %p123, %p124
    %p126 = scmp.ne.s32.totalorder %s112, %s113
    %p127 = scmp.eq.s32.totalorder %s16, 1
    %p128 = por %p126, %p127
    %p130 = scmp.ne.s32.totalorder %s113, %s129
    %p131 = scmp.eq.s32.totalorder %s16, 0
    %p132 = por %p130, %p131
    %p133 = scmp.le.s32.totalorder 1, %s10
    %p134 = scmp.lt.s32.totalorder %s10, 3
    %p135 = pnand %p133, %p134
    %p136 = pneg %p135
    // Predicated region
    $region9: #{base_encoder_forward.8} parent=5 // pred_check
      _
    $region10: #{base_encoder_forward.8} parent=5 // pred_check_branch
      %138 = sbr.rel (%p135) target = $region12
    $region11: #{base_encoder_forward.8} parent=5 // pred_region
      %s139 = ssub.s32 %s10, 1
      // Predicated region
      $region13: #{base_encoder_forward.8} parent=11 // pred_check
        %p140 = pneg %p57
      $region14: #{base_encoder_forward.8} parent=11 // pred_check_branch
        %142 = sbr.rel (%p140) target = $region16
      $region15: #{base_encoder_forward.8} parent=11 // pred_region
        _
      $region16: #{base_encoder_forward.8} parent=11 // pred_fallthru
        _
      // Predicated region
      $region17: #{base_encoder_forward.8} parent=11 // pred_check
        %p143 = pneg %p78
      $region18: #{base_encoder_forward.8} parent=11 // pred_check_branch
        %145 = sbr.rel (%p143) target = $region20
      $region19: #{base_encoder_forward.8} parent=11 // pred_region
        _
      $region20: #{base_encoder_forward.8} parent=11 // pred_fallthru
        _
      // Predicated region
      $region21: #{base_encoder_forward.8} parent=11 // pred_check
        %p146 = pneg %p99
      $region22: #{base_encoder_forward.8} parent=11 // pred_check_branch
        %148 = sbr.rel (%p146) target = $region24
      $region23: #{base_encoder_forward.8} parent=11 // pred_region
        _
      $region24: #{base_encoder_forward.8} parent=11 // pred_fallthru
        _
    $region12: #{base_encoder_forward.8} parent=5 // pred_fallthru
      _
    %p149 = scmp.lt.s32.totalorder %s10, 2
    // Predicated region
    $region25: #{base_encoder_forward.8} parent=5 // pred_check
      %p150 = pneg %p149
    $region26: #{base_encoder_forward.8} parent=5 // pred_check_branch
      %152 = sbr.rel (%p150) target = $region28
    $region27: #{base_encoder_forward.8} parent=5 // pred_region
      // Predicated region
      $region29: #{base_encoder_forward.8} parent=27 // pred_check
        %p153 = pneg %p30
      $region30: #{base_encoder_forward.8} parent=27 // pred_check_branch
        %155 = sbr.rel (%p153) target = $region32
      $region31: #{base_encoder_forward.8} parent=27 // pred_region
        %p156 = scmp.lt.s32.totalorder %s10, 1
        %s157 = scalar_select %p156, %s10, 1
        %s158 = smul.addr %s157, 4
        %s159 = scalar_lea.vmem %s0, %s158
      $region32: #{base_encoder_forward.8} parent=27 // pred_fallthru
        _
    $region28: #{base_encoder_forward.8} parent=5 // pred_fallthru
      _
    %p160 = scmp.le.s32.totalorder 1, %s10
    %p161 = scmp.lt.s32.totalorder %s10, 3
    %p162 = pnand %p160, %p161
    %p163 = pneg %p162
    // Predicated region
    $region33: #{base_encoder_forward.8} parent=5 // pred_check
      _
    $region34: #{base_encoder_forward.8} parent=5 // pred_check_branch
      %165 = sbr.rel (%p162) target = $region36
    $region35: #{base_encoder_forward.8} parent=5 // pred_region
      %s166 = ssub.s32 %s10, 1
      %p167 = scmp.lt.s32.totalorder %s15, 1
      %s168 = scalar_select %p167, %s15, 1
      %s169 = smul.addr %s168, 4
      %s170 = scalar_lea.vmem %s0, %s169
      %p171 = pneg %p36
      %p172 = pneg %p33
      %p173 = pneg %p57
      %p174 = pneg %p54
      %p175 = pneg %p78
      %p176 = pneg %p75
      %p177 = pneg %p99
      %p178 = pneg %p96
      %p179 = pneg %p125
      %p180 = pneg %p122
      %p181 = scmp.lt.s32.totalorder %s15, 1
      %s182 = scalar_select %p181, %s15, 1
      %s183 = smul.addr %s182, 8
      %s184 = scalar_lea.vmem %s4, %s183
      %p185 = scmp.lt.s32.totalorder %s15, 1
      %s186 = scalar_select %p185, %s15, 1
      %s187 = smul.addr %s186, 4
      %s188 = scalar_lea.vmem %s0, %s187
      %p189 = scmp.lt.s32.totalorder %s15, 1
      %s190 = scalar_select %p189, %s15, 1
      %s191 = smul.addr %s190, 8
      %s192 = scalar_lea.vmem %s4, %s191
      %v193 = vld [vmem:[%s188] sm:$0xf]
      %v194 = vld [vmem:[%s1] sm:$0xf]
      %v195 = vld [vmem:[%s1 + $0x4] sm:$0xf]
      %v196 = vld [vmem:[%s1 + $0x8] sm:$0xf]
      %v197 = vld [vmem:[%s1 + $0xc] sm:$0xf]
      %v198 = vld [vmem:[%s1 + $0x10] sm:$0xf]
      %v199 = vld [vmem:[%s1 + $0x14] sm:$0xf]
      %v200 = vld [vmem:[%s1 + $0x18] sm:$0xf]
      %v201 = vld [vmem:[%s1 + $0x1c] sm:$0xf]
      %v202 = vld [vmem:[%s1 + $0x20] sm:$0xf]
      %v203 = vld [vmem:[%s1 + $0x24] sm:$0xf]
      %v204 = vld [vmem:[%s1 + $0x28] sm:$0xf]
      %v205 = vld [vmem:[%s1 + $0x2c] sm:$0xf]
      %v206 = vld [vmem:[%s1 + $0x30] sm:$0xf]
      %v207 = vld [vmem:[%s1 + $0x34] sm:$0xf]
      %v208 = vld [vmem:[%s1 + $0x38] sm:$0xf]
      %v209 = vld [vmem:[%s1 + $0x3c] sm:$0xf]
      %v210 = vld [vmem:[%s2] sm:$0x1]
      %v212 = vperm.slane %v210, 0
      %v230 = vunpack.c.l.b16 %v194
      %v231 = vunpack.c.l.b16 %v195
      %v232 = vunpack.c.l.b16 %v196
      %v233 = vunpack.c.l.b16 %v197
      %v234 = vunpack.c.l.b16 %v198
      %v235 = vunpack.c.l.b16 %v199
      %v236 = vunpack.c.l.b16 %v200
      %v237 = vunpack.c.l.b16 %v201
      %v238 = vunpack.c.l.b16 %v202
      %v239 = vunpack.c.l.b16 %v203
      %v240 = vunpack.c.l.b16 %v204
      %v241 = vunpack.c.l.b16 %v205
      %v242 = vunpack.c.l.b16 %v206
      %v243 = vunpack.c.l.b16 %v207
      %v244 = vunpack.c.l.b16 %v208
      %v245 = vunpack.c.l.b16 %v209
      %v246 = vpack.c.b16 %v231, %v230
      %v247 = vpack.c.b16 %v233, %v232
      %v248 = vpack.c.b16 %v235, %v234
      %v249 = vpack.c.b16 %v237, %v236
      %v250 = vpack.c.b16 %v239, %v238
      %v251 = vpack.c.b16 %v241, %v240
      %v252 = vpack.c.b16 %v243, %v242
      %v253 = vpack.c.b16 %v245, %v244
      %262 = vmatpush.bf16.msra.mxu0 %v253
      %263 = vmatpush.bf16.msra.mxu0 %v252
      %264 = vmatpush.bf16.msra.mxu0 %v251
      %265 = vmatpush.bf16.msra.mxu0 %v250
      %266 = vmatpush.bf16.msra.mxu0 %v249
      %267 = vmatpush.bf16.msra.mxu0 %v248
      %268 = vmatpush.bf16.msra.mxu0 %v247
      %269 = vmatpush.bf16.msra.mxu0 %v246
      %270 = vmatmul.bf16.gmra.mxu0 %v193
      %v271 = vpop.f32.mrf.mxu0
      %v272 = vadd.f32 %v212, %v271
      %v273 = vpop.f32.mrf.mxu0
      %274 = vdwg.mxu0
      %v275 = vmul.f32 %v272, 5.656854
      %v276 = vld [vmem:[%s3] sm:$0xff]
      %v277 = vadd.f32 %v275, %v276
      %vm278 = vcmask 261120
      %279 = vst.msk [vmem:[%s192] sm:$0xff] %vm278, %v277
      %p280 = scmp.lt.s32.totalorder %s15, 1
      %s281 = scalar_select %p280, %s15, 1
      %s282 = smul.addr %s281, 8
      %s283 = scalar_lea.vmem %s4, %s282
      // Predicated region
      $region37: #{base_encoder_forward.8} parent=35 // pred_check
        %p284 = pneg %p122
      $region38: #{base_encoder_forward.8} parent=35 // pred_check_branch
        %286 = sbr.rel (%p284) target = $region40
      $region39: #{base_encoder_forward.8} parent=35 // pred_region
        _
      $region40: #{base_encoder_forward.8} parent=35 // pred_fallthru
        _
    $region36: #{base_encoder_forward.8} parent=5 // pred_fallthru
      _
    %p287 = scmp.le.s32.totalorder 2, %s10
    // Predicated region
    $region41: #{base_encoder_forward.8} parent=5 // pred_check
      %p288 = pneg %p287
    $region42: #{base_encoder_forward.8} parent=5 // pred_check_branch
      %290 = sbr.rel (%p288) target = $region44
    $region43: #{base_encoder_forward.8} parent=5 // pred_region
      %s291 = ssub.s32 %s10, 2
      // Predicated region
      $region45: #{base_encoder_forward.8} parent=43 // pred_check
        %p292 = pneg %p128
      $region46: #{base_encoder_forward.8} parent=43 // pred_check_branch
        %294 = sbr.rel (%p292) target = $region48
      $region47: #{base_encoder_forward.8} parent=43 // pred_region
        %p295 = scmp.lt.s32.totalorder %s16, 1
        %s296 = scalar_select %p295, %s16, 1
        %s297 = smul.addr %s296, 8
        %s298 = scalar_lea.vmem %s4, %s297
      $region48: #{base_encoder_forward.8} parent=43 // pred_fallthru
        _
    $region44: #{base_encoder_forward.8} parent=5 // pred_fallthru
      _
  $region6: #{base_encoder_forward.8} parent=0 // loop_footer
    %s14 = sadd.s32 1, %s10
  $region7: #{base_encoder_forward.8} parent=0 // loop_footer_branch
    %9 = sbr.rel target = $region3
  $region8: #{base_encoder_forward.8} parent=0 // loop_exit
    _

// kernel: base_encoder_forward.11
$region0: #{base_encoder_forward.11}
  #allocation0 [shape = 'u32[]', space=smem, size = 0x4, offset = 0x4, fixed_abs, tag = 'smem constant byte address 0x4 - core index']
  #allocation1 [shape = 'u32[72,128]{1,0:T(1,128)}', space=vmem, size = 0x9000, scoped, tag = 'internal scratch']
  %s0 = inlined_call_operand.vmem [shape: f32[16,64], index: 0, kind: input, shape index: {}]
  %s1 = inlined_call_operand.vmem [shape: f32[1,64], index: 1, kind: input, shape index: {}]
  %s2 = inlined_call_operand.vmem [shape: f32[1,64], index: 2, kind: input, shape index: {}]
  %s3 = inlined_call_operand.hbm [shape: f32[16,64], index: 3, kind: output, shape index: {}]
  %s4 = sld [smem:[#allocation0]]
  $region22: #{base_encoder_forward.11} parent=0
    _
  %s6 = ssub.s32 1, %s4
  %s7 = scalar_select 0, %s6, %s4
  $region1: #{base_encoder_forward.11} parent=0
    #allocation2 [shape = 'u8[8192]{0}', space=vmem, size = 0x2000, scoped, tag = 'output window, operand 0, single buffered']
    #allocation3 [shape = 's32[1]{0}', space=sflag, size = 0x4, scoped, tag = 'scoped memory for base_encoder_forward.11']
    %8 = vsyncpa [#allocation3], 0
    // Predicated region
    $region2: #{base_encoder_forward.11} parent=1 // pred_check
      _
    $region3: #{base_encoder_forward.11} parent=1 // pred_check_branch
      %10 = sbr.rel (0) target = $region5
    $region4: #{base_encoder_forward.11} parent=1 // pred_region
      _
    $region5: #{base_encoder_forward.11} parent=1 // pred_fallthru
      _
    // Predicated region
    $region6: #{base_encoder_forward.11} parent=1 // pred_check
      _
    $region7: #{base_encoder_forward.11} parent=1 // pred_check_branch
      %12 = sbr.rel (0) target = $region9
    $region8: #{base_encoder_forward.11} parent=1 // pred_region
      _
    $region9: #{base_encoder_forward.11} parent=1 // pred_fallthru
      _
    // Predicated region
    $region10: #{base_encoder_forward.11} parent=1 // pred_check
      _
    $region11: #{base_encoder_forward.11} parent=1 // pred_check_branch
      %14 = sbr.rel (0) target = $region13
    $region12: #{base_encoder_forward.11} parent=1 // pred_region
      _
    $region13: #{base_encoder_forward.11} parent=1 // pred_fallthru
      _
    %v15 = vld [vmem:[%s0] sm:$0xff]
    %v16 = vld [vmem:[%s0 + $0x8] sm:$0xff]
    %vm17 = vcmask 523264
    %v18 = vsel %vm17, %v15, 0.0
    %19 = vadd.xlane.f32.xlu0 %v18
    %v20 = vpop.xlane.xlu0 %19
    %v21 = vsel %vm17, %v16, 0.0
    %22 = vadd.xlane.f32.xlu0 %v21
    %v23 = vpop.xlane.xlu0 %22
    %v24 = vrcp.pop 64.0
    %v25 = vmul.f32 64.0, %v24
    %v26 = vsub.f32 1.0, %v25
    %v27 = vmul.f32 %v24, %v26
    %v28 = vadd.f32 %v24, %v27
    %vm29 = vweird.f32 %v24
    %v30 = vsel %vm29, %v24, %v28
    %v31 = vmul.f32 %v20, %v30
    %v32 = vmul.f32 %v23, %v30
    %v33 = vsub.f32 %v15, %v31
    %v34 = vsub.f32 %v16, %v32
    %v35 = vmul.f32 %v33, %v33
    %v36 = vmul.f32 %v34, %v34
    %v37 = vsel %vm17, %v35, 0.0
    %38 = vadd.xlane.f32.xlu0 %v37
    %v39 = vpop.xlane.xlu0 %38
    %v40 = vsel %vm17, %v36, 0.0
    %41 = vadd.xlane.f32.xlu0 %v40
    %v42 = vpop.xlane.xlu0 %41
    %v43 = vmul.f32 %v39, %v30
    %v44 = vmul.f32 %v42, %v30
    %v45 = vadd.f32 %v43, 1e-12
    %v46 = vadd.f32 %v44, 1e-12
    %v47 = vrsqrt.pop %v45
    %v48 = vmul.f32 %v47, %v45
    %v49 = vmul.f32 %v48, %v47
    %v50 = vmul.f32 0.5, %v49
    %v51 = vsub.f32 1.5, %v50
    %v52 = vmul.f32 %v47, %v51
    %vm53 = vweird.f32 %v45
    %vm54 = vweird.f32 %v47
    %vm55 = vmor %vm53, %vm54
    %v56 = vsel %vm55, %v47, %v52
    %v57 = vrsqrt.pop %v46
    %v58 = vmul.f32 %v57, %v46
    %v59 = vmul.f32 %v58, %v57
    %v60 = vmul.f32 0.5, %v59
    %v61 = vsub.f32 1.5, %v60
    %v62 = vmul.f32 %v57, %v61
    %vm63 = vweird.f32 %v46
    %vm64 = vweird.f32 %v57
    %vm65 = vmor %vm63, %vm64
    %v66 = vsel %vm65, %v57, %v62
    %v67 = vmul.f32 %v33, %v56
    %v68 = vmul.f32 %v34, %v66
    %v69 = vld [vmem:[%s1] sm:$0x1]
    %v71 = vperm.slane %v69, 0
    %v73 = vmul.f32 %v67, %v71
    %v74 = vmul.f32 %v68, %v71
    %v75 = vld [vmem:[%s2] sm:$0x1]
    %v77 = vperm.slane %v75, 0
    %v79 = vadd.f32 %v73, %v77
    %v80 = vadd.f32 %v74, %v77
    %81 = vst.msk [vmem:[#allocation2] sm:$0xff] %vm17, %v79
    %82 = vst.msk [vmem:[#allocation2 + $0x8] sm:$0xff] %vm17, %v80
    // Predicated region
    $region14: #{base_encoder_forward.11} parent=1 // pred_check
      _
    $region15: #{base_encoder_forward.11} parent=1 // pred_check_branch
      %84 = sbr.rel (0) target = $region17
    $region16: #{base_encoder_forward.11} parent=1 // pred_region
      %86 = vsyncadd [#allocation3], 0
      %s87 = sshll.u32 [#allocation2], 4
      %s88 = int_to_ptr.vmem [resolvable:$true] %s87
      %s89 = sshll.u32 %s3, 4
      %s90 = int_to_ptr.hbm [resolvable:$true] %s89
      %95 = dma.vmem_to_hbm [thread:$0]  %s88, 256, %s90, [#allocation3], 128, 128, 8
    $region17: #{base_encoder_forward.11} parent=1 // pred_fallthru
      _
    // Predicated region
    $region18: #{base_encoder_forward.11} parent=1 // pred_check
      _
    $region19: #{base_encoder_forward.11} parent=1 // pred_check_branch
      %97 = sbr.rel (0) target = $region21
    $region20: #{base_encoder_forward.11} parent=1 // pred_region
      %99 = dma.done [#allocation3], 256
    $region21: #{base_encoder_forward.11} parent=1 // pred_fallthru
      _
    %100 = vsyncpa [#allocation3], 1

// kernel: base_encoder_forward.9
$region0: #{base_encoder_forward.9}
  #allocation0 [shape = 'u32[]', space=smem, size = 0x4, offset = 0x4, fixed_abs, tag = 'smem constant byte address 0x4 - core index']
  #allocation1 [shape = 'u32[72,128]{1,0:T(1,128)}', space=vmem, size = 0x9000, scoped, tag = 'internal scratch']
  #allocation2 [shape = 'f32[8,32]{1,0:T(8,128)}', space=vmem, size = 0x1000, scoped, tag = 'scratch operand']
  #allocation3 [shape = 's32[1]{0}', space=sflag, size = 0x4, scoped, tag = 'scoped memory for base_encoder_forward.9']
  #allocation4 [shape = 'u8[512]{0}', space=smem, size = 0x200, scoped, tag = 'prefetched SMEM operand 0']
  %s0 = inlined_call_operand.vmem [shape: s32[2], index: 0, kind: input, shape index: {}]
  %s1 = inlined_call_operand.vmem [shape: f32[2,8,32], index: 1, kind: input, shape index: {}]
  %s2 = inlined_call_operand.vmem [shape: f32[1,32], index: 2, kind: input, shape index: {}]
  %s3 = inlined_call_operand.vmem [shape: f32[1,32], index: 3, kind: input, shape index: {}]
  %s4 = inlined_call_operand.vmem [shape: bf16[4,32,24], index: 4, kind: input, shape index: {}]
  %s5 = inlined_call_operand.vmem [shape: f32[4,1,24], index: 5, kind: input, shape index: {}]
  %s6 = inlined_call_operand.vmem [shape: bf16[4,8,32], index: 6, kind: input, shape index: {}]
  %s7 = inlined_call_operand.vmem [shape: f32[1,32], index: 7, kind: input, shape index: {}]
  %s8 = inlined_call_operand.vmem [shape: f32[1,32], index: 8, kind: input, shape index: {}]
  %s9 = inlined_call_operand.vmem [shape: f32[1,32], index: 9, kind: input, shape index: {}]
  %s10 = inlined_call_operand.vmem [shape: bf16[32,64], index: 10, kind: input, shape index: {}]
  %s11 = inlined_call_operand.vmem [shape: f32[1,64], index: 11, kind: input, shape index: {}]
  %s12 = inlined_call_operand.vmem [shape: bf16[64,32], index: 12, kind: input, shape index: {}]
  %s13 = inlined_call_operand.vmem [shape: f32[1,32], index: 13, kind: input, shape index: {}]
  %s14 = inlined_call_operand.vmem [shape: f32[2,8,32], index: 14, kind: output, shape index: {}]
  %s15 = sld [smem:[#allocation0]]
  $region92: #{base_encoder_forward.9} parent=0
    _
  %s17 = ssub.s32 1, %s15
  %s18 = scalar_select 0, %s17, %s15
  %s20 = sshll.u32 %s0, 4
  %s21 = int_to_ptr.vmem [resolvable:$true] %s20
  %23 = dma.vmem_to_smem %s21, 16, [#allocation4], [#allocation3]
  %25 = dma.done [#allocation3], 16
  %26 = sfence
  loop: start=0, step=1, limit=4
  $region2: #{base_encoder_forward.9} parent=0 // loop_pre_header
    _
  $region3: #{base_encoder_forward.9} parent=0 // loop_header
    %s28 = sphi 0, %s32
    %p29 = scmp.ge.s32.totalorder %s28, 4
    %s38 = sphi 0, %s40
    %s41 = sphi 0, %s38
    %s42 = sphi 0, %s41
    %s58 = sphi 0, %s42
    %s62 = sphi 0, %s62
    %s64 = sphi 0, %s62
    %s65 = sphi 0, %s64
    %s79 = sphi 0, %s65
    %s83 = sphi 0, %s83
    %s85 = sphi 0, %s83
    %s86 = sphi 0, %s85
    %s100 = sphi 0, %s86
    %s104 = sphi 0, %s104
    %s106 = sphi 0, %s104
    %s107 = sphi 0, %s106
    %s121 = sphi 0, %s107
    %s125 = sphi 0, %s125
    %s127 = sphi 0, %s125
    %s128 = sphi 0, %s127
    %s142 = sphi 0, %s128
    %s146 = sphi 0, %s146
    %s148 = sphi 0, %s146
    %s149 = sphi 0, %s148
    %s163 = sphi 0, %s149
    %s167 = sphi 0, %s167
    %s169 = sphi 0, %s167
    %s170 = sphi 0, %s169
    %s184 = sphi 0, %s170
    %s188 = sphi 0, %s188
    %s190 = sphi 0, %s188
    %s191 = sphi 0, %s190
    %s205 = sphi 0, %s191
    %s209 = sphi 0, %s209
    %s211 = sphi 0, %s209
    %s212 = sphi 0, %s211
    %s226 = sphi 0, %s212
    %s230 = sphi 0, %s230
    %s232 = sphi 0, %s230
    %s233 = sphi 0, %s232
    %s247 = sphi 0, %s233
    %s251 = sphi 0, %s251
    %s253 = sphi 0, %s251
    %s254 = sphi 0, %s253
    %s268 = sphi 0, %s254
    %s272 = sphi 0, %s272
    %s274 = sphi 0, %s272
    %s275 = sphi 0, %s274
    %s289 = sphi 0, %s275
    %s293 = sphi 0, %s293
    %s295 = sphi 0, %s293
    %s296 = sphi 0, %s295
    %s310 = sphi 0, %s296
    %s316 = sphi 0, %s318
    %s319 = sphi 0, %s316
    %s320 = sphi 0, %s319
    %s336 = sphi 0, %s320
  $region4: #{base_encoder_forward.9} parent=0 // loop_header_branch
    %31 = sbr.rel (%p29) target = $region8
  $region5: #{base_encoder_forward.9} parent=0 // loop_body
    %s33 = ssub.s32 %s28, 1
    %s34 = ssub.s32 %s28, 2
    %s35 = sadd.s32 %s28, 1
    %s36 = ssub.s32 %s28, %s35
    %p37 = scmp.eq.s32.totalorder %s36, 0
    %s39 = sadd.s32 %s38, 1
    %s40 = scalar_select %p37, %s38, %s39
    %p43 = pneg %p37
    %p44 = scmp.eq.s32.totalorder %s28, 1
    %p45 = por %p43, %p44
    %p46 = scmp.ne.s32.totalorder %s38, %s41
    %p47 = scmp.eq.s32.totalorder %s28, 0
    %p48 = por %p46, %p47
    %p49 = scmp.ne.s32.totalorder %s38, %s41
    %p50 = scmp.eq.s32.totalorder %s33, 1
    %p51 = por %p49, %p50
    %p52 = scmp.ne.s32.totalorder %s41, %s42
    %p53 = scmp.eq.s32.totalorder %s33, 0
    %p54 = por %p52, %p53
    %p55 = scmp.ne.s32.totalorder %s41, %s42
    %p56 = scmp.eq.s32.totalorder %s34, 1
    %p57 = por %p55, %p56
    %p59 = scmp.ne.s32.totalorder %s42, %s58
    %p60 = scmp.eq.s32.totalorder %s34, 0
    %p61 = por %p59, %p60
    %s63 = sadd.s32 %s62, 1
    %p66 = scmp.eq.s32.totalorder %s28, 1
    %p67 = scmp.ne.s32.totalorder %s62, %s64
    %p68 = scmp.eq.s32.totalorder %s28, 0
    %p69 = por %p67, %p68
    %p70 = scmp.ne.s32.totalorder %s62, %s64
    %p71 = scmp.eq.s32.totalorder %s33, 1
    %p72 = por %p70, %p71
    %p73 = scmp.ne.s32.totalorder %s64, %s65
    %p74 = scmp.eq.s32.totalorder %s33, 0
    %p75 = por %p73, %p74
    %p76 = scmp.ne.s32.totalorder %s64, %s65
    %p77 = scmp.eq.s32.totalorder %s34, 1
    %p78 = por %p76, %p77
    %p80 = scmp.ne.s32.totalorder %s65, %s79
    %p81 = scmp.eq.s32.totalorder %s34, 0
    %p82 = por %p80, %p81
    %s84 = sadd.s32 %s83, 1
    %p87 = scmp.eq.s32.totalorder %s28, 1
    %p88 = scmp.ne.s32.totalorder %s83, %s85
    %p89 = scmp.eq.s32.totalorder %s28, 0
    %p90 = por %p88, %p89
    %p91 = scmp.ne.s32.totalorder %s83, %s85
    %p92 = scmp.eq.s32.totalorder %s33, 1
    %p93 = por %p91, %p92
    %p94 = scmp.ne.s32.totalorder %s85, %s86
    %p95 = scmp.eq.s32.totalorder %s33, 0
    %p96 = por %p94, %p95
    %p97 = scmp.ne.s32.totalorder %s85, %s86
    %p98 = scmp.eq.s32.totalorder %s34, 1
    %p99 = por %p97, %p98
    %p101 = scmp.ne.s32.totalorder %s86, %s100
    %p102 = scmp.eq.s32.totalorder %s34, 0
    %p103 = por %p101, %p102
    %s105 = sadd.s32 %s104, 1
    %p108 = scmp.eq.s32.totalorder %s28, 1
    %p109 = scmp.ne.s32.totalorder %s104, %s106
    %p110 = scmp.eq.s32.totalorder %s28, 0
    %p111 = por %p109, %p110
    %p112 = scmp.ne.s32.totalorder %s104, %s106
    %p113 = scmp.eq.s32.totalorder %s33, 1
    %p114 = por %p112, %p113
    %p115 = scmp.ne.s32.totalorder %s106, %s107
    %p116 = scmp.eq.s32.totalorder %s33, 0
    %p117 = por %p115, %p116
    %p118 = scmp.ne.s32.totalorder %s106, %s107
    %p119 = scmp.eq.s32.totalorder %s34, 1
    %p120 = por %p118, %p119
    %p122 = scmp.ne.s32.totalorder %s107, %s121
    %p123 = scmp.eq.s32.totalorder %s34, 0
    %p124 = por %p122, %p123
    %s126 = sadd.s32 %s125, 1
    %p129 = scmp.eq.s32.totalorder %s28, 1
    %p130 = scmp.ne.s32.totalorder %s125, %s127
    %p131 = scmp.eq.s32.totalorder %s28, 0
    %p132 = por %p130, %p131
    %p133 = scmp.ne.s32.totalorder %s125, %s127
    %p134 = scmp.eq.s32.totalorder %s33, 1
    %p135 = por %p133, %p134
    %p136 = scmp.ne.s32.totalorder %s127, %s128
    %p137 = scmp.eq.s32.totalorder %s33, 0
    %p138 = por %p136, %p137
    %p139 = scmp.ne.s32.totalorder %s127, %s128
    %p140 = scmp.eq.s32.totalorder %s34, 1
    %p141 = por %p139, %p140
    %p143 = scmp.ne.s32.totalorder %s128, %s142
    %p144 = scmp.eq.s32.totalorder %s34, 0
    %p145 = por %p143, %p144
    %s147 = sadd.s32 %s146, 1
    %p150 = scmp.eq.s32.totalorder %s28, 1
    %p151 = scmp.ne.s32.totalorder %s146, %s148
    %p152 = scmp.eq.s32.totalorder %s28, 0
    %p153 = por %p151, %p152
    %p154 = scmp.ne.s32.totalorder %s146, %s148
    %p155 = scmp.eq.s32.totalorder %s33, 1
    %p156 = por %p154, %p155
    %p157 = scmp.ne.s32.totalorder %s148, %s149
    %p158 = scmp.eq.s32.totalorder %s33, 0
    %p159 = por %p157, %p158
    %p160 = scmp.ne.s32.totalorder %s148, %s149
    %p161 = scmp.eq.s32.totalorder %s34, 1
    %p162 = por %p160, %p161
    %p164 = scmp.ne.s32.totalorder %s149, %s163
    %p165 = scmp.eq.s32.totalorder %s34, 0
    %p166 = por %p164, %p165
    %s168 = sadd.s32 %s167, 1
    %p171 = scmp.eq.s32.totalorder %s28, 1
    %p172 = scmp.ne.s32.totalorder %s167, %s169
    %p173 = scmp.eq.s32.totalorder %s28, 0
    %p174 = por %p172, %p173
    %p175 = scmp.ne.s32.totalorder %s167, %s169
    %p176 = scmp.eq.s32.totalorder %s33, 1
    %p177 = por %p175, %p176
    %p178 = scmp.ne.s32.totalorder %s169, %s170
    %p179 = scmp.eq.s32.totalorder %s33, 0
    %p180 = por %p178, %p179
    %p181 = scmp.ne.s32.totalorder %s169, %s170
    %p182 = scmp.eq.s32.totalorder %s34, 1
    %p183 = por %p181, %p182
    %p185 = scmp.ne.s32.totalorder %s170, %s184
    %p186 = scmp.eq.s32.totalorder %s34, 0
    %p187 = por %p185, %p186
    %s189 = sadd.s32 %s188, 1
    %p192 = scmp.eq.s32.totalorder %s28, 1
    %p193 = scmp.ne.s32.totalorder %s188, %s190
    %p194 = scmp.eq.s32.totalorder %s28, 0
    %p195 = por %p193, %p194
    %p196 = scmp.ne.s32.totalorder %s188, %s190
    %p197 = scmp.eq.s32.totalorder %s33, 1
    %p198 = por %p196, %p197
    %p199 = scmp.ne.s32.totalorder %s190, %s191
    %p200 = scmp.eq.s32.totalorder %s33, 0
    %p201 = por %p199, %p200
    %p202 = scmp.ne.s32.totalorder %s190, %s191
    %p203 = scmp.eq.s32.totalorder %s34, 1
    %p204 = por %p202, %p203
    %p206 = scmp.ne.s32.totalorder %s191, %s205
    %p207 = scmp.eq.s32.totalorder %s34, 0
    %p208 = por %p206, %p207
    %s210 = sadd.s32 %s209, 1
    %p213 = scmp.eq.s32.totalorder %s28, 1
    %p214 = scmp.ne.s32.totalorder %s209, %s211
    %p215 = scmp.eq.s32.totalorder %s28, 0
    %p216 = por %p214, %p215
    %p217 = scmp.ne.s32.totalorder %s209, %s211
    %p218 = scmp.eq.s32.totalorder %s33, 1
    %p219 = por %p217, %p218
    %p220 = scmp.ne.s32.totalorder %s211, %s212
    %p221 = scmp.eq.s32.totalorder %s33, 0
    %p222 = por %p220, %p221
    %p223 = scmp.ne.s32.totalorder %s211, %s212
    %p224 = scmp.eq.s32.totalorder %s34, 1
    %p225 = por %p223, %p224
    %p227 = scmp.ne.s32.totalorder %s212, %s226
    %p228 = scmp.eq.s32.totalorder %s34, 0
    %p229 = por %p227, %p228
    %s231 = sadd.s32 %s230, 1
    %p234 = scmp.eq.s32.totalorder %s28, 1
    %p235 = scmp.ne.s32.totalorder %s230, %s232
    %p236 = scmp.eq.s32.totalorder %s28, 0
    %p237 = por %p235, %p236
    %p238 = scmp.ne.s32.totalorder %s230, %s232
    %p239 = scmp.eq.s32.totalorder %s33, 1
    %p240 = por %p238, %p239
    %p241 = scmp.ne.s32.totalorder %s232, %s233
    %p242 = scmp.eq.s32.totalorder %s33, 0
    %p243 = por %p241, %p242
    %p244 = scmp.ne.s32.totalorder %s232, %s233
    %p245 = scmp.eq.s32.totalorder %s34, 1
    %p246 = por %p244, %p245
    %p248 = scmp.ne.s32.totalorder %s233, %s247
    %p249 = scmp.eq.s32.totalorder %s34, 0
    %p250 = por %p248, %p249
    %s252 = sadd.s32 %s251, 1
    %p255 = scmp.eq.s32.totalorder %s28, 1
    %p256 = scmp.ne.s32.totalorder %s251, %s253
    %p257 = scmp.eq.s32.totalorder %s28, 0
    %p258 = por %p256, %p257
    %p259 = scmp.ne.s32.totalorder %s251, %s253
    %p260 = scmp.eq.s32.totalorder %s33, 1
    %p261 = por %p259, %p260
    %p262 = scmp.ne.s32.totalorder %s253, %s254
    %p263 = scmp.eq.s32.totalorder %s33, 0
    %p264 = por %p262, %p263
    %p265 = scmp.ne.s32.totalorder %s253, %s254
    %p266 = scmp.eq.s32.totalorder %s34, 1
    %p267 = por %p265, %p266
    %p269 = scmp.ne.s32.totalorder %s254, %s268
    %p270 = scmp.eq.s32.totalorder %s34, 0
    %p271 = por %p269, %p270
    %s273 = sadd.s32 %s272, 1
    %p276 = scmp.eq.s32.totalorder %s28, 1
    %p277 = scmp.ne.s32.totalorder %s272, %s274
    %p278 = scmp.eq.s32.totalorder %s28, 0
    %p279 = por %p277, %p278
    %p280 = scmp.ne.s32.totalorder %s272, %s274
    %p281 = scmp.eq.s32.totalorder %s33, 1
    %p282 = por %p280, %p281
    %p283 = scmp.ne.s32.totalorder %s274, %s275
    %p284 = scmp.eq.s32.totalorder %s33, 0
    %p285 = por %p283, %p284
    %p286 = scmp.ne.s32.totalorder %s274, %s275
    %p287 = scmp.eq.s32.totalorder %s34, 1
    %p288 = por %p286, %p287
    %p290 = scmp.ne.s32.totalorder %s275, %s289
    %p291 = scmp.eq.s32.totalorder %s34, 0
    %p292 = por %p290, %p291
    %s294 = sadd.s32 %s293, 1
    %p297 = scmp.eq.s32.totalorder %s28, 1
    %p298 = scmp.ne.s32.totalorder %s293, %s295
    %p299 = scmp.eq.s32.totalorder %s28, 0
    %p300 = por %p298, %p299
    %p301 = scmp.ne.s32.totalorder %s293, %s295
    %p302 = scmp.eq.s32.totalorder %s33, 1
    %p303 = por %p301, %p302
    %p304 = scmp.ne.s32.totalorder %s295, %s296
    %p305 = scmp.eq.s32.totalorder %s33, 0
    %p306 = por %p304, %p305
    %p307 = scmp.ne.s32.totalorder %s295, %s296
    %p308 = scmp.eq.s32.totalorder %s34, 1
    %p309 = por %p307, %p308
    %p311 = scmp.ne.s32.totalorder %s296, %s310
    %p312 = scmp.eq.s32.totalorder %s34, 0
    %p313 = por %p311, %p312
    %s314 = ssub.s32 %s28, %s35
    %p315 = scmp.eq.s32.totalorder %s314, 0
    %s317 = sadd.s32 %s316, 1
    %s318 = scalar_select %p315, %s316, %s317
    %p321 = pneg %p315
    %p322 = scmp.eq.s32.totalorder %s28, 1
    %p323 = por %p321, %p322
    %p324 = scmp.ne.s32.totalorder %s316, %s319
    %p325 = scmp.eq.s32.totalorder %s28, 0
    %p326 = por %p324, %p325
    %p327 = scmp.ne.s32.totalorder %s316, %s319
    %p328 = scmp.eq.s32.totalorder %s33, 1
    %p329 = por %p327, %p328
    %p330 = scmp.ne.s32.totalorder %s319, %s320
    %p331 = scmp.eq.s32.totalorder %s33, 0
    %p332 = por %p330, %p331
    %p333 = scmp.ne.s32.totalorder %s319, %s320
    %p334 = scmp.eq.s32.totalorder %s34, 1
    %p335 = por %p333, %p334
    %p337 = scmp.ne.s32.totalorder %s320, %s336
    %p338 = scmp.eq.s32.totalorder %s34, 0
    %p339 = por %p337, %p338
    %p340 = scmp.le.s32.totalorder 1, %s28
    %p341 = scmp.lt.s32.totalorder %s28, 3
    %p342 = pnand %p340, %p341
    %p343 = pneg %p342
    // Predicated region
    $region9: #{base_encoder_forward.9} parent=5 // pred_check
      _
    $region10: #{base_encoder_forward.9} parent=5 // pred_check_branch
      %345 = sbr.rel (%p342) target = $region12
    $region11: #{base_encoder_forward.9} parent=5 // pred_region
      %s346 = ssub.s32 %s28, 1
      // Predicated region
      $region13: #{base_encoder_forward.9} parent=11 // pred_check
        %p347 = pneg %p75
      $region14: #{base_encoder_forward.9} parent=11 // pred_check_branch
        %349 = sbr.rel (%p347) target = $region16
      $region15: #{base_encoder_forward.9} parent=11 // pred_region
        _
      $region16: #{base_encoder_forward.9} parent=11 // pred_fallthru
        _
      // Predicated region
      $region17: #{base_encoder_forward.9} parent=11 // pred_check
        %p350 = pneg %p96
      $region18: #{base_encoder_forward.9} parent=11 // pred_check_branch
        %352 = sbr.rel (%p350) target = $region20
      $region19: #{base_encoder_forward.9} parent=11 // pred_region
        _
      $region20: #{base_encoder_forward.9} parent=11 // pred_fallthru
        _
      // Predicated region
      $region21: #{base_encoder_forward.9} parent=11 // pred_check
        %p353 = pneg %p117
      $region22: #{base_encoder_forward.9} parent=11 // pred_check_branch
        %355 = sbr.rel (%p353) target = $region24
      $region23: #{base_encoder_forward.9} parent=11 // pred_region
        _
      $region24: #{base_encoder_forward.9} parent=11 // pred_fallthru
        _
      // Predicated region
      $region25: #{base_encoder_forward.9} parent=11 // pred_check
        %p356 = pneg %p138
      $region26: #{base_encoder_forward.9} parent=11 // pred_check_branch
        %358 = sbr.rel (%p356) target = $region28
      $region27: #{base_encoder_forward.9} parent=11 // pred_region
        _
      $region28: #{base_encoder_forward.9} parent=11 // pred_fallthru
        _
      // Predicated region
      $region29: #{base_encoder_forward.9} parent=11 // pred_check
        %p359 = pneg %p159
      $region30: #{base_encoder_forward.9} parent=11 // pred_check_branch
        %361 = sbr.rel (%p359) target = $region32
      $region31: #{base_encoder_forward.9} parent=11 // pred_region
        _
      $region32: #{base_encoder_forward.9} parent=11 // pred_fallthru
        _
      // Predicated region
      $region33: #{base_encoder_forward.9} parent=11 // pred_check
        %p362 = pneg %p180
      $region34: #{base_encoder_forward.9} parent=11 // pred_check_branch
        %364 = sbr.rel (%p362) target = $region36
      $region35: #{base_encoder_forward.9} parent=11 // pred_region
        _
      $region36: #{base_encoder_forward.9} parent=11 // pred_fallthru
        _
      // Predicated region
      $region37: #{base_encoder_forward.9} parent=11 // pred_check
        %p365 = pneg %p201
      $region38: #{base_encoder_forward.9} parent=11 // pred_check_branch
        %367 = sbr.rel (%p365) target = $region40
      $region39: #{base_encoder_forward.9} parent=11 // pred_region
        _
      $region40: #{base_encoder_forward.9} parent=11 // pred_fallthru
        _
      // Predicated region
      $region41: #{base_encoder_forward.9} parent=11 // pred_check
        %p368 = pneg %p222
      $region42: #{base_encoder_forward.9} parent=11 // pred_check_branch
        %370 = sbr.rel (%p368) target = $region44
      $region43: #{base_encoder_forward.9} parent=11 // pred_region
        _
      $region44: #{base_encoder_forward.9} parent=11 // pred_fallthru
        _
      // Predicated region
      $region45: #{base_encoder_forward.9} parent=11 // pred_check
        %p371 = pneg %p243
      $region46: #{base_encoder_forward.9} parent=11 // pred_check_branch
        %373 = sbr.rel (%p371) target = $region48
      $region47: #{base_encoder_forward.9} parent=11 // pred_region
        _
      $region48: #{base_encoder_forward.9} parent=11 // pred_fallthru
        _
      // Predicated region
      $region49: #{base_encoder_forward.9} parent=11 // pred_check
        %p374 = pneg %p264
      $region50: #{base_encoder_forward.9} parent=11 // pred_check_branch
        %376 = sbr.rel (%p374) target = $region52
      $region51: #{base_encoder_forward.9} parent=11 // pred_region
        _
      $region52: #{base_encoder_forward.9} parent=11 // pred_fallthru
        _
      // Predicated region
      $region53: #{base_encoder_forward.9} parent=11 // pred_check
        %p377 = pneg %p285
      $region54: #{base_encoder_forward.9} parent=11 // pred_check_branch
        %379 = sbr.rel (%p377) target = $region56
      $region55: #{base_encoder_forward.9} parent=11 // pred_region
        _
      $region56: #{base_encoder_forward.9} parent=11 // pred_fallthru
        _
      // Predicated region
      $region57: #{base_encoder_forward.9} parent=11 // pred_check
        %p380 = pneg %p306
      $region58: #{base_encoder_forward.9} parent=11 // pred_check_branch
        %382 = sbr.rel (%p380) target = $region60
      $region59: #{base_encoder_forward.9} parent=11 // pred_region
        _
      $region60: #{base_encoder_forward.9} parent=11 // pred_fallthru
        _
    $region12: #{base_encoder_forward.9} parent=5 // pred_fallthru
      _
    %p383 = scmp.lt.s32.totalorder %s28, 2
    // Predicated region
    $region61: #{base_encoder_forward.9} parent=5 // pred_check
      %p384 = pneg %p383
    $region62: #{base_encoder_forward.9} parent=5 // pred_check_branch
      %386 = sbr.rel (%p384) target = $region64
    $region63: #{base_encoder_forward.9} parent=5 // pred_region
      // Predicated region
      $region65: #{base_encoder_forward.9} parent=63 // pred_check
        %p387 = pneg %p48
      $region66: #{base_encoder_forward.9} parent=63 // pred_check_branch
        %389 = sbr.rel (%p387) target = $region68
      $region67: #{base_encoder_forward.9} parent=63 // pred_region
        %p390 = scmp.lt.s32.totalorder %s28, 1
        %s391 = scalar_select %p390, %s28, 1
        %s392 = smul.addr %s391, 8
        %s393 = scalar_lea.vmem %s1, %s392
      $region68: #{base_encoder_forward.9} parent=63 // pred_fallthru
        _
    $region64: #{base_encoder_forward.9} parent=5 // pred_fallthru
      _
    %p394 = scmp.le.s32.totalorder 1, %s28
    %p395 = scmp.lt.s32.totalorder %s28, 3
    %p396 = pnand %p394, %p395
    %p397 = pneg %p396
    // Predicated region
    $region69: #{base_encoder_forward.9} parent=5 // pred_check
      _
    $region70: #{base_encoder_forward.9} parent=5 // pred_check_branch
      %399 = sbr.rel (%p396) target = $region72
    $region71: #{base_encoder_forward.9} parent=5 // pred_region
      %s400 = ssub.s32 %s28, 1
      %p401 = scmp.lt.s32.totalorder %s33, 1
      %s402 = scalar_select %p401, %s33, 1
      %s403 = smul.addr %s402, 8
      %s404 = scalar_lea.vmem %s1, %s403
      %p405 = pneg %p54
      %p406 = pneg %p51
      %p407 = pneg %p75
      %p408 = pneg %p72
      %p409 = pneg %p96
      %p410 = pneg %p93
      %p411 = pneg %p117
      %p412 = pneg %p114
      %p413 = pneg %p138
      %p414 = pneg %p135
      %p415 = pneg %p159
      %p416 = pneg %p156
      %p417 = pneg %p180
      %p418 = pneg %p177
      %p419 = pneg %p201
      %p420 = pneg %p198
      %p421 = pneg %p222
      %p422 = pneg %p219
      %p423 = pneg %p243
      %p424 = pneg %p240
      %p425 = pneg %p264
      %p426 = pneg %p261
      %p427 = pneg %p285
      %p428 = pneg %p282
      %p429 = pneg %p306
      %p430 = pneg %p303
      %p431 = pneg %p332
      %p432 = pneg %p329
      %p433 = scmp.lt.s32.totalorder %s33, 1
      %s434 = scalar_select %p433, %s33, 1
      %s435 = smul.addr %s434, 8
      %s436 = scalar_lea.vmem %s14, %s435
      %p437 = scmp.lt.s32.totalorder %s33, 1
      %s438 = scalar_select %p437, %s33, 1
      %s439 = smul.addr %s438, 8
      %s440 = scalar_lea.vmem %s1, %s439
      %p441 = scmp.lt.s32.totalorder %s33, 1
      %s442 = scalar_select %p441, %s33, 1
      %s443 = smul.addr %s442, 8
      %s444 = scalar_lea.vmem %s14, %s443
      %v446 = vld [vmem:[%s440] sm:$0xff]
      %vm447 = vcmask 261120
      %v448 = vsel %vm447, %v446, 0.0
      %449 = vadd.xlane.f32.xlu0 %v448
      %v450 = vpop.xlane.xlu0 %449
      %v451 = vrcp.pop 32.0
      %v452 = vmul.f32 32.0, %v451
      %v453 = vsub.f32 1.0, %v452
      %v454 = vmul.f32 %v451, %v453
      %v455 = vadd.f32 %v451, %v454
      %vm456 = vweird.f32 %v451
      %v457 = vsel %vm456, %v451, %v455
      %v458 = vmul.f32 %v450, %v457
      %v459 = vsub.f32 %v446, %v458
      %v460 = vmul.f32 %v459, %v459
      %v461 = vsel %vm447, %v460, 0.0
      %462 = vadd.xlane.f32.xlu0 %v461
      %v463 = vpop.xlane.xlu0 %462
      %v464 = vmul.f32 %v463, %v457
      %v465 = vadd.f32 %v464, 1e-12
      %v466 = vrsqrt.pop %v465
      %v467 = vmul.f32 %v466, %v465
      %v468 = vmul.f32 %v467, %v466
      %v469 = vmul.f32 0.5, %v468
      %v470 = vsub.f32 1.5, %v469
      %v471 = vmul.f32 %v466, %v470
      %vm472 = vweird.f32 %v465
      %vm473 = vweird.f32 %v466
      %vm474 = vmor %vm472, %vm473
      %v475 = vsel %vm474, %v466, %v471
      %v476 = vmul.f32 %v459, %v475
      %v477 = vld [vmem:[%s2] sm:$0x1]
      %v479 = vperm.slane %v477, 0
      %v481 = vmul.f32 %v476, %v479
      %v482 = vld [vmem:[%s3] sm:$0x1]
      %v484 = vperm.slane %v482, 0
      %v486 = vadd.f32 %v481, %v484
      %v487 = vpack.c.bf16 %v486, %v486
      %v488 = vlaneseq
      %v489 = vand.u32 %v488, 127
      %s490 = sld [smem:[#allocation4 + %s33]]
      %v491 = vstv %s490
      %vm492 = vcmp.lt.s32.totalorder %v489, %v491
      %v493 = vsel %vm492, 0.0, -1e+09
      %494 = vst.msk [vmem:[#allocation2] sm:$0xff] %vm447, 0.0
      loop: start=0, step=1, limit=4
      $region73: #{base_encoder_forward.9} parent=71 // loop_pre_header
        _
      $region74: #{base_encoder_forward.9} parent=71 // loop_header
        %s496 = sphi 0, %s500
        %p497 = scmp.ge.s32.totalorder %s496, 4
      $region75: #{base_encoder_forward.9} parent=71 // loop_header_branch
        %499 = sbr.rel (%p497) target = $region79
      $region76: #{base_encoder_forward.9} parent=71 // loop_body
        %s501 = smul.u32 %s496, 4
        %s502 = smul.addr %s501, 4
        %s503 = scalar_lea.vmem %s4, %s502
        %v504 = vld [vmem:[%s503] sm:$0xf]
        %v505 = vld [vmem:[%s503 + $0x4] sm:$0xf]
        %v506 = vld [vmem:[%s503 + $0x8] sm:$0xf]
        %v507 = vld [vmem:[%s503 + $0xc] sm:$0xf]
        %s508 = scalar_lea.vmem %s5, %s496
        %v509 = vld [vmem:[%s508] sm:$0x1]
        %v511 = vperm.slane %v509, 0
        %v517 = vunpack.c.l.b16 %v504
        %v518 = vunpack.c.l.b16 %v505
        %v519 = vunpack.c.l.b16 %v506
        %v520 = vunpack.c.l.b16 %v507
        %v521 = vpack.c.b16 %v518, %v517
        %v522 = vpack.c.b16 %v520, %v519
        %v526 = vsel %vm447, %v487, 0
        %528 = vmatpush.bf16.msra.mxu0 0
        %529 = vmatpush.bf16.msra.mxu0 0
        %530 = vmatpush.bf16.msra.mxu0 0
        %531 = vmatpush.bf16.msra.mxu0 0
        %532 = vmatpush.bf16.msra.mxu0 0
        %533 = vmatpush.bf16.msra.mxu0 0
        %534 = vmatpush.bf16.msra.mxu0 %v522
        %535 = vmatpush.bf16.msra.mxu0 %v521
        %536 = vmatmul.bf16.gmra.mxu0 %v526
        %v537 = vpop.f32.mrf.mxu0
        %v538 = vadd.f32 %v511, %v537
        %v539 = vpop.f32.mrf.mxu0
        %540 = vdwg.mxu0
        %v541 = vpack.c.bf16 %v538, %v538
        %543 = vrot.lane.b32.xlu0 %v541, 120
        %v544 = vpop.permute.xlu0 %543
        %vm545 = vcmask 64512
        %v547 = vsel %vm545, %v541, 0
        %v550 = vsel %vm545, %v544, 0
        %552 = vmatpush.bf16.xpose.msra.mxu0 0
        %553 = vmatpush.bf16.xpose.msra.mxu0 0
        %554 = vmatpush.bf16.xpose.msra.mxu0 0
        %555 = vmatpush.bf16.xpose.msra.mxu0 0
        %556 = vmatpush.bf16.xpose.msra.mxu0 0
        %557 = vmatpush.bf16.xpose.msra.mxu0 0
        %558 = vmatpush.bf16.xpose.msra.mxu0 0
        %559 = vmatpush.bf16.xpose.msra.mxu0 %v550
        %560 = vmatmul.bf16.gmra.mxu0 %v547
        %v561 = vpop.f32.mrf.mxu0
        %v562 = vadd.f32 0.0, %v561
        %v563 = vpop.f32.mrf.mxu0
        %564 = vdwg.mxu0
        %v565 = vmul.f32 %v562, 0.35355338
        %v566 = vadd.f32 %v565, %v493
        %v567 = vsel %vm545, %v566, -inf
        %568 = vmax.xlane.f32.xlu0 %v567
        %v569 = vpop.xlane.xlu0 %568
        %v570 = vsub.f32 %v566, %v569
        %v571 = vmul.f32 %v570, 1.442695
        %v572 = vpow.pop %v571
        %v573 = vsel %vm545, %v572, 0.0
        %574 = vadd.xlane.f32.xlu0 %v573
        %v575 = vpop.xlane.xlu0 %574
        %v576 = vrcp.pop %v575
        %v577 = vmul.f32 %v572, %v576
        %v578 = vpack.c.bf16 %v577, %v577
        %579 = vrot.lane.b32.xlu0 %v541, 112
        %v580 = vpop.permute.xlu0 %579
        %v582 = vsel %vm545, %v578, 0
        %vm584 = vcmask 1043456
        %v586 = vsel %vm584, %v580, 0
        %588 = vmatpush.bf16.msra.mxu0 0
        %589 = vmatpush.bf16.msra.mxu0 0
        %590 = vmatpush.bf16.msra.mxu0 0
        %591 = vmatpush.bf16.msra.mxu0 0
        %592 = vmatpush.bf16.msra.mxu0 0
        %593 = vmatpush.bf16.msra.mxu0 0
        %594 = vmatpush.bf16.msra.mxu0 0
        %595 = vmatpush.bf16.msra.mxu0 %v586
        %596 = vmatmul.bf16.gmra.mxu0 %v582
        %v597 = vpop.f32.mrf.mxu0
        %v598 = vadd.f32 0.0, %v597
        %v599 = vpop.f32.mrf.mxu0
        %600 = vdwg.mxu0
        %v601 = vld [vmem:[#allocation2] sm:$0xff]
        %v602 = vpack.c.bf16 %v598, %v598
        %s603 = smul.addr %s496, 4
        %s604 = scalar_lea.vmem %s6, %s603
        %v605 = vld [vmem:[%s604] sm:$0xf]
        %v607 = vsel %vm545, %v602, 0
        %v610 = vsel %vm584, %v605, 0
        %612 = vmatpush.bf16.msra.mxu0 0
        %613 = vmatpush.bf16.msra.mxu0 0
        %614 = vmatpush.bf16.msra.mxu0 0
        %615 = vmatpush.bf16.msra.mxu0 0
        %616 = vmatpush.bf16.msra.mxu0 0
        %617 = vmatpush.bf16.msra.mxu0 0
        %618 = vmatpush.bf16.msra.mxu0 0
        %619 = vmatpush.bf16.msra.mxu0 %v610
        %620 = vmatmul.bf16.gmra.mxu0 %v607
        %v621 = vpop.f32.mrf.mxu0
        %v622 = vadd.f32 0.0, %v621
        %v623 = vpop.f32.mrf.mxu0
        %624 = vdwg.mxu0
        %v625 = vadd.f32 %v601, %v622
        %626 = vst.msk [vmem:[#allocation2] sm:$0xff] %vm447, %v625
      $region77: #{base_encoder_forward.9} parent=71 // loop_footer
        %s500 = sadd.s32 1, %s496
      $region78: #{base_encoder_forward.9} parent=71 // loop_footer_branch
        %495 = sbr.rel target = $region74
      $region79: #{base_encoder_forward.9} parent=71 // loop_exit
        _
      %v627 = vld [vmem:[#allocation2] sm:$0xff]
      %v628 = vadd.f32 %v446, %v627
      %v629 = vld [vmem:[%s7] sm:$0x1]
      %v631 = vperm.slane %v629, 0
      %v633 = vadd.f32 %v628, %v631
      %v634 = vsel %vm447, %v633, 0.0
      %635 = vadd.xlane.f32.xlu0 %v634
      %v636 = vpop.xlane.xlu0 %635
      %v637 = vmul.f32 %v636, %v457
      %v638 = vsub.f32 %v633, %v637
      %v639 = vmul.f32 %v638, %v638
      %v640 = vsel %vm447, %v639, 0.0
      %641 = vadd.xlane.f32.xlu0 %v640
      %v642 = vpop.xlane.xlu0 %641
      %v643 = vmul.f32 %v642, %v457
      %v644 = vadd.f32 %v643, 1e-12
      %v645 = vrsqrt.pop %v644
      %v646 = vmul.f32 %v645, %v644
      %v647 = vmul.f32 %v646, %v645
      %v648 = vmul.f32 0.5, %v647
      %v649 = vsub.f32 1.5, %v648
      %v650 = vmul.f32 %v645, %v649
      %vm651 = vweird.f32 %v644
      %vm652 = vweird.f32 %v645
      %vm653 = vmor %vm651, %vm652
      %v654 = vsel %vm653, %v645, %v650
      %v655 = vmul.f32 %v638, %v654
      %v656 = vld [vmem:[%s8] sm:$0x1]
      %v658 = vperm.slane %v656, 0
      %v660 = vmul.f32 %v655, %v658
      %v661 = vld [vmem:[%s9] sm:$0x1]
      %v663 = vperm.slane %v661, 0
      %v665 = vadd.f32 %v660, %v663
      %v666 = vpack.c.bf16 %v665, %v665
      %v667 = vld [vmem:[%s10] sm:$0xf]
      %v668 = vld [vmem:[%s10 + $0x4] sm:$0xf]
      %v669 = vld [vmem:[%s10 + $0x8] sm:$0xf]
      %v670 = vld [vmem:[%s10 + $0xc] sm:$0xf]
      %v671 = vld [vmem:[%s11] sm:$0x1]
      %v673 = vperm.slane %v671, 0
      %v679 = vunpack.c.l.b16 %v667
      %v680 = vunpack.c.l.b16 %v668
      %v681 = vunpack.c.l.b16 %v669
      %v682 = vunpack.c.l.b16 %v670
      %v683 = vpack.c.b16 %v680, %v679
      %v684 = vpack.c.b16 %v682, %v681
      %v688 = vsel %vm447, %v666, 0
      %690 = vmatpush.bf16.msra.mxu0 0
      %691 = vmatpush.bf16.msra.mxu0 0
      %692 = vmatpush.bf16.msra.mxu0 0
      %693 = vmatpush.bf16.msra.mxu0 0
      %694 = vmatpush.bf16.msra.mxu0 0
      %695 = vmatpush.bf16.msra.mxu0 0
      %696 = vmatpush.bf16.msra.mxu0 %v684
      %697 = vmatpush.bf16.msra.mxu0 %v683
      %698 = vmatmul.bf16.gmra.mxu0 %v688
      %v699 = vpop.f32.mrf.mxu0
      %v700 = vadd.f32 %v673, %v699
      %v701 = vpop.f32.mrf.mxu0
      %702 = vdwg.mxu0
      %v703 = vmax.f32 %v700, 0.0
      %v704 = vpack.c.bf16 %v703, %v703
      %v705 = vld [vmem:[%s12] sm:$0xf]
      %v706 = vld [vmem:[%s12 + $0x4] sm:$0xf]
      %v707 = vld [vmem:[%s12 + $0x8] sm:$0xf]
      %v708 = vld [vmem:[%s12 + $0xc] sm:$0xf]
      %v709 = vld [vmem:[%s12 + $0x10] sm:$0xf]
      %v710 = vld [vmem:[%s12 + $0x14] sm:$0xf]
      %v711 = vld [vmem:[%s12 + $0x18] sm:$0xf]
      %v712 = vld [vmem:[%s12 + $0x1c] sm:$0xf]
      %v713 = vld [vmem:[%s13] sm:$0x1]
      %v715 = vperm.slane %v713, 0
      %v725 = vunpack.c.l.b16 %v705
      %v726 = vunpack.c.l.b16 %v706
      %v727 = vunpack.c.l.b16 %v707
      %v728 = vunpack.c.l.b16 %v708
      %v729 = vunpack.c.l.b16 %v709
      %v730 = vunpack.c.l.b16 %v710
      %v731 = vunpack.c.l.b16 %v711
      %v732 = vunpack.c.l.b16 %v712
      %v733 = vpack.c.b16 %v726, %v725
      %v734 = vpack.c.b16 %v728, %v727
      %v735 = vpack.c.b16 %v730, %v729
      %v736 = vpack.c.b16 %v732, %v731
      %vm741 = vcmask 523264
      %v743 = vsel %vm741, %v704, 0
      %745 = vmatpush.bf16.msra.mxu0 0
      %746 = vmatpush.bf16.msra.mxu0 0
      %747 = vmatpush.bf16.msra.mxu0 0
      %748 = vmatpush.bf16.msra.mxu0 0
      %749 = vmatpush.bf16.msra.mxu0 %v736
      %750 = vmatpush.bf16.msra.mxu0 %v735
      %751 = vmatpush.bf16.msra.mxu0 %v734
      %752 = vmatpush.bf16.msra.mxu0 %v733
      %753 = vmatmul.bf16.gmra.mxu0 %v743
      %v754 = vpop.f32.mrf.mxu0
      %v755 = vadd.f32 %v715, %v754
      %v756 = vpop.f32.mrf.mxu0
      %757 = vdwg.mxu0
      %v758 = vadd.f32 %v633, %v755
      %759 = vst.msk [vmem:[%s444] sm:$0xff] %vm447, %v758
      %p760 = scmp.lt.s32.totalorder %s33, 1
      %s761 = scalar_select %p760, %s33, 1
      %s762 = smul.addr %s761, 8
      %s763 = scalar_lea.vmem %s14, %s762
      // Predicated region
      $region80: #{base_encoder_forward.9} parent=71 // pred_check
        %p764 = pneg %p329
      $region81: #{base_encoder_forward.9} parent=71 // pred_check_branch
        %766 = sbr.rel (%p764) target = $region83
      $region82: #{base_encoder_forward.9} parent=71 // pred_region
        _
      $region83: #{base_encoder_forward.9} parent=71 // pred_fallthru
        _
    $region72: #{base_encoder_forward.9} parent=5 // pred_fallthru
      _
    %p767 = scmp.le.s32.totalorder 2, %s28
    // Predicated region
    $region84: #{base_encoder_forward.9} parent=5 // pred_check
      %p768 = pneg %p767
    $region85: #{base_encoder_forward.9} parent=5 // pred_check_branch
      %770 = sbr.rel (%p768) target = $region87
    $region86: #{base_encoder_forward.9} parent=5 // pred_region
      %s771 = ssub.s32 %s28, 2
      // Predicated region
      $region88: #{base_encoder_forward.9} parent=86 // pred_check
        %p772 = pneg %p335
      $region89: #{base_encoder_forward.9} parent=86 // pred_check_branch
        %774 = sbr.rel (%p772) target = $region91
      $region90: #{base_encoder_forward.9} parent=86 // pred_region
        %p775 = scmp.lt.s32.totalorder %s34, 1
        %s776 = scalar_select %p775, %s34, 1
        %s777 = smul.addr %s776, 8
        %s778 = scalar_lea.vmem %s14, %s777
      $region91: #{base_encoder_forward.9} parent=86 // pred_fallthru
        _
    $region87: #{base_encoder_forward.9} parent=5 // pred_fallthru
      _
  $region6: #{base_encoder_forward.9} parent=0 // loop_footer
    %s32 = sadd.s32 1, %s28
  $region7: #{base_encoder_forward.9} parent=0 // loop_footer_branch
    %27 = sbr.rel target = $region3
  $region8: #{base_encoder_forward.9} parent=0 // loop_exit
    _

</llo_original>
